<compile_context>
chip_gen: v5e
topology: v5e:2x2
jax: 0.10.0
libtpu: 0.0.40
codegen_flags: <defaults>
</compile_context>

<pallas_src>
import functools

import jax
import jax.numpy as jnp
from jax.experimental import pallas as pl
from jax.experimental.pallas import tpu as pltpu


_LANE = 128


def _round_up(n, m):
    return (n + m - 1) // m * m


def vae_kernel(
    x_ref, eps_ref,
    w1_ref, b1_ref,
    w2_ref, b2_ref,
    w3_ref, b3_ref,          # fused mu|logvar head: [d_h2, 2*latent_pad]
    w4_ref, b4_ref,
    w5_ref, b5_ref,
    w6_ref, b6_ref,
    recon_ref, mu_ref, logvar_ref,
    *, latent_pad,
):
    cdtype = x_ref.dtype  # compute dtype fed to the MXU (f32 or bf16)

    x = x_ref[...]

    # ---- encode ----
    h1 = jnp.maximum(
        jnp.dot(x, w1_ref[...], preferred_element_type=jnp.float32) + b1_ref[...],
        0.0,
    )
    h2 = jnp.maximum(
        jnp.dot(h1.astype(cdtype), w2_ref[...], preferred_element_type=jnp.float32)
        + b2_ref[...],
        0.0,
    )
    # Fused mu/logvar head: one wide matmul, slice on a lane boundary.
    head = (
        jnp.dot(h2.astype(cdtype), w3_ref[...], preferred_element_type=jnp.float32)
        + b3_ref[...]
    )
    mu = head[:, :latent_pad]
    logvar = head[:, latent_pad:]

    # ---- reparameterize (f32):  z = mu + eps * exp(0.5 * logvar) ----
    std = jnp.exp(0.5 * logvar)
    z = mu + eps_ref[...].astype(jnp.float32) * std

    # ---- decode ----
    h3 = jnp.maximum(
        jnp.dot(z.astype(cdtype), w4_ref[...], preferred_element_type=jnp.float32)
        + b4_ref[...],
        0.0,
    )
    h4 = jnp.maximum(
        jnp.dot(h3.astype(cdtype), w5_ref[...], preferred_element_type=jnp.float32)
        + b5_ref[...],
        0.0,
    )
    recon = (
        jnp.dot(h4.astype(cdtype), w6_ref[...], preferred_element_type=jnp.float32)
        + b6_ref[...]
    )

    recon_ref[...] = recon.astype(recon_ref.dtype)
    mu_ref[...] = mu.astype(mu_ref.dtype)
    logvar_ref[...] = logvar.astype(logvar_ref.dtype)


def vae_forward(x, eps, params, *, batch_tile=128, compute_dtype=jnp.float32):
    """Fused VAE forward pass.

    x:   [B, input_dim] float32
    eps: [B, latent_dim] float32 standard-normal noise
    params: dict with w1,b1,w2,b2,w31,b31,w32,b32,w4,b4,w5,b5,w6,b6
            (weights [in, out], biases [1, out]; unpadded, f32)
    Returns (recon_x [B, input_dim], mu [B, latent], logvar [B, latent]) f32.
    """
    B, input_dim = x.shape
    latent_dim = eps.shape[1]
    first_dim = params["w1"].shape[1]
    second_dim = params["w2"].shape[1]

    # Lane-dense (multiple-of-128) feature dims.
    d_in = _round_up(input_dim, _LANE)
    d_h1 = _round_up(first_dim, _LANE)
    d_h2 = _round_up(second_dim, _LANE)
    d_lat = _round_up(latent_dim, _LANE)

    # Sublane-aligned batch tile (8 rows for f32, 16 for bf16 operands).
    sub = 16 if compute_dtype == jnp.bfloat16 else 8
    batch_tile = max(sub, _round_up(min(batch_tile, _round_up(B, sub)), sub))
    B_p = _round_up(B, batch_tile)
    grid = (B_p // batch_tile,)

    def pad_w(w, din, dout):
        wp = jnp.zeros((din, dout), jnp.float32)
        wp = wp.at[: w.shape[0], : w.shape[1]].set(w.astype(jnp.float32))
        return wp.astype(compute_dtype)

    def pad_b(b, dout):
        bp = jnp.zeros((1, dout), jnp.float32)
        return bp.at[:, : b.shape[1]].set(b.astype(jnp.float32))

    w1 = pad_w(params["w1"], d_in, d_h1); b1 = pad_b(params["b1"], d_h1)
    w2 = pad_w(params["w2"], d_h1, d_h2); b2 = pad_b(params["b2"], d_h2)
    # Fused mu|logvar head.
    w3 = jnp.concatenate(
        [pad_w(params["w31"], d_h2, d_lat), pad_w(params["w32"], d_h2, d_lat)],
        axis=1,
    )
    b3 = jnp.concatenate(
        [pad_b(params["b31"], d_lat), pad_b(params["b32"], d_lat)], axis=1
    )
    w4 = pad_w(params["w4"], d_lat, d_h2); b4 = pad_b(params["b4"], d_h2)
    w5 = pad_w(params["w5"], d_h2, d_h1); b5 = pad_b(params["b5"], d_h1)
    w6 = pad_w(params["w6"], d_h1, d_in); b6 = pad_b(params["b6"], d_in)

    # Zero-padded, compute-dtype activations / noise.
    xp = jnp.zeros((B_p, d_in), compute_dtype)
    xp = xp.at[:B, :input_dim].set(x.astype(compute_dtype))
    ep = jnp.zeros((B_p, d_lat), compute_dtype)
    ep = ep.at[:B, :latent_dim].set(eps.astype(compute_dtype))

    weight_args = [w1, b1, w2, b2, w3, b3, w4, b4, w5, b5, w6, b6]

    def batch_spec(feat):
        return pl.BlockSpec((batch_tile, feat), lambda i: (i, 0))

    def resident_spec(arr):
        # Constant index_map: the weight tile stays resident in VMEM across
        # the whole batch grid (no re-fetch per step).
        return pl.BlockSpec(arr.shape, lambda i: (0, 0))

    in_specs = [batch_spec(d_in), batch_spec(d_lat)]
    in_specs += [resident_spec(a) for a in weight_args]

    out_shapes = (
        jax.ShapeDtypeStruct((B_p, d_in), jnp.float32),
        jax.ShapeDtypeStruct((B_p, d_lat), jnp.float32),
        jax.ShapeDtypeStruct((B_p, d_lat), jnp.float32),
    )
    out_specs = (
        batch_spec(d_in),
        batch_spec(d_lat),
        batch_spec(d_lat),
    )

    kernel = functools.partial(vae_kernel, latent_pad=d_lat)

    recon_p, mu_p, logvar_p = pl.pallas_call(
        kernel,
        grid_spec=pltpu.PrefetchScalarGridSpec(
            num_scalar_prefetch=0,
            grid=grid,
            in_specs=in_specs,
            out_specs=out_specs,
        ),
        out_shape=out_shapes,
        compiler_params=pltpu.CompilerParams(
            dimension_semantics=("parallel",),
        ),
    )(xp, ep, *weight_args)

    # Strip padding.
    recon = recon_p[:B, :input_dim]
    mu = mu_p[:B, :latent_dim]
    logvar = logvar_p[:B, :latent_dim]
    return recon, mu, logvar


def init_params(key, input_dim, first_layer_dim, second_layer_dim, latent_dim):
    """Deterministic synthetic init. Weights are [in, out], biases [1, out]."""
    dims = [
        ("w1", input_dim, first_layer_dim),
        ("w2", first_layer_dim, second_layer_dim),
        ("w31", second_layer_dim, latent_dim),
        ("w32", second_layer_dim, latent_dim),
        ("w4", latent_dim, second_layer_dim),
        ("w5", second_layer_dim, first_layer_dim),
        ("w6", first_layer_dim, input_dim),
    ]
    params = {}
    for name, fan_in, fan_out in dims:
        key, kw, kb = jax.random.split(key, 3)
        bound = 1.0 / jnp.sqrt(fan_in)
        params[name] = jax.random.uniform(
            kw, (fan_in, fan_out), jnp.float32, -bound, bound
        )
        params["b" + name[1:]] = jax.random.uniform(
            kb, (1, fan_out), jnp.float32, -bound, bound
        )
    return params


def vae_ref(x, eps, p):
    """Pure-JAX reference for correctness checking."""
    h1 = jnp.maximum(x @ p["w1"] + p["b1"], 0.0)
    h2 = jnp.maximum(h1 @ p["w2"] + p["b2"], 0.0)
    mu = h2 @ p["w31"] + p["b31"]
    logvar = h2 @ p["w32"] + p["b32"]
    z = mu + eps * jnp.exp(0.5 * logvar)
    h3 = jnp.maximum(z @ p["w4"] + p["b4"], 0.0)
    h4 = jnp.maximum(h3 @ p["w5"] + p["b5"], 0.0)
    recon = h4 @ p["w6"] + p["b6"]
    return recon, mu, logvar


if __name__ == "__main__":
    # Small, module-consistent shapes (batch large enough for grid=2 tiles).
    batch = 256
    input_dim = 64
    first_layer_dim = 64
    second_layer_dim = 32
    latent_dim = 16

    key = jax.random.PRNGKey(0)
    key, kx, keps, kparams = jax.random.split(key, 4)

    x = jax.random.normal(kx, (batch, input_dim), jnp.float32)
    # TODO(synk): torch.randn_like noise is sampled host-side for determinism.
    eps = jax.random.normal(keps, (batch, latent_dim), jnp.float32)
    params = init_params(kparams, input_dim, first_layer_dim,
                         second_layer_dim, latent_dim)

    recon_r, mu_r, logvar_r = vae_ref(x, eps, params)

    # f32 path (strict check).
    recon, mu, logvar = vae_forward(x, eps, params, batch_tile=128,
                                    compute_dtype=jnp.float32)
    jax.block_until_ready((recon, mu, logvar))
    assert recon.shape == (batch, input_dim)
    assert mu.shape == (batch, latent_dim)
    assert logvar.shape == (batch, latent_dim)
    assert jnp.allclose(recon, recon_r, atol=1e-4, rtol=1e-4)
    assert jnp.allclose(mu, mu_r, atol=1e-4, rtol=1e-4)
    assert jnp.allclose(logvar, logvar_r, atol=1e-4, rtol=1e-4)

    # bf16 compute path for v6e/v7x MXU rates (f32 accumulation; loose check).
    recon_b, mu_b, logvar_b = vae_forward(x, eps, params, batch_tile=128,
                                          compute_dtype=jnp.bfloat16)
    jax.block_until_ready((recon_b, mu_b, logvar_b))
    assert jnp.allclose(recon_b, recon_r, atol=1e-1, rtol=1e-1)
    assert jnp.allclose(mu_b, mu_r, atol=1e-1, rtol=1e-1)
    assert jnp.allclose(logvar_b, logvar_r, atol=1e-1, rtol=1e-1)

    print("KERNEL_OK")
</pallas_src>

<mosaic_0001>
module attributes {stable_mosaic.version = 11 : i64} {
  func.func @vae_kernel(%arg0: i32, %arg1: memref<128x128xf32, #tpu.memory_space<vmem>>, %arg2: memref<128x128xf32, #tpu.memory_space<vmem>>, %arg3: memref<128x128xf32, #tpu.memory_space<vmem>>, %arg4: memref<1x128xf32, #tpu.memory_space<vmem>>, %arg5: memref<128x128xf32, #tpu.memory_space<vmem>>, %arg6: memref<1x128xf32, #tpu.memory_space<vmem>>, %arg7: memref<128x256xf32, #tpu.memory_space<vmem>>, %arg8: memref<1x256xf32, #tpu.memory_space<vmem>>, %arg9: memref<128x128xf32, #tpu.memory_space<vmem>>, %arg10: memref<1x128xf32, #tpu.memory_space<vmem>>, %arg11: memref<128x128xf32, #tpu.memory_space<vmem>>, %arg12: memref<1x128xf32, #tpu.memory_space<vmem>>, %arg13: memref<128x128xf32, #tpu.memory_space<vmem>>, %arg14: memref<1x128xf32, #tpu.memory_space<vmem>>, %arg15: memref<128x128xf32, #tpu.memory_space<vmem>>, %arg16: memref<128x128xf32, #tpu.memory_space<vmem>>, %arg17: memref<128x128xf32, #tpu.memory_space<vmem>>) attributes {dimension_semantics = [#tpu.dimension_semantics<parallel>], iteration_bounds = array<i64: 2>, scalar_prefetch = 0 : i64, scratch_operands = 0 : i64, tpu.core_type = #tpu.core_type<tc>, window_params = [{transform_indices = @transform_0, window_bounds = array<i64: 128, 128>}, {transform_indices = @transform_1, window_bounds = array<i64: 128, 128>}, {pipeline_mode = #tpu.pipeline_mode<synchronous>, transform_indices = @transform_2, window_bounds = array<i64: 128, 128>}, {pipeline_mode = #tpu.pipeline_mode<synchronous>, transform_indices = @transform_3, window_bounds = array<i64: 1, 128>}, {pipeline_mode = #tpu.pipeline_mode<synchronous>, transform_indices = @transform_4, window_bounds = array<i64: 128, 128>}, {pipeline_mode = #tpu.pipeline_mode<synchronous>, transform_indices = @transform_5, window_bounds = array<i64: 1, 128>}, {pipeline_mode = #tpu.pipeline_mode<synchronous>, transform_indices = @transform_6, window_bounds = array<i64: 128, 256>}, {pipeline_mode = #tpu.pipeline_mode<synchronous>, transform_indices = @transform_7, window_bounds = array<i64: 1, 256>}, {pipeline_mode = #tpu.pipeline_mode<synchronous>, transform_indices = @transform_8, window_bounds = array<i64: 128, 128>}, {pipeline_mode = #tpu.pipeline_mode<synchronous>, transform_indices = @transform_9, window_bounds = array<i64: 1, 128>}, {pipeline_mode = #tpu.pipeline_mode<synchronous>, transform_indices = @transform_10, window_bounds = array<i64: 128, 128>}, {pipeline_mode = #tpu.pipeline_mode<synchronous>, transform_indices = @transform_11, window_bounds = array<i64: 1, 128>}, {pipeline_mode = #tpu.pipeline_mode<synchronous>, transform_indices = @transform_12, window_bounds = array<i64: 128, 128>}, {pipeline_mode = #tpu.pipeline_mode<synchronous>, transform_indices = @transform_13, window_bounds = array<i64: 1, 128>}, {transform_indices = @transform_14, window_bounds = array<i64: 128, 128>}, {transform_indices = @transform_15, window_bounds = array<i64: 128, 128>}, {transform_indices = @transform_16, window_bounds = array<i64: 128, 128>}]} {
    %c0 = arith.constant 0 : index
    %c0_0 = arith.constant 0 : index
    %0 = vector.load %arg1[%c0, %c0_0] : memref<128x128xf32, #tpu.memory_space<vmem>>, vector<128x128xf32>
    %c0_1 = arith.constant 0 : index
    %c0_2 = arith.constant 0 : index
    %1 = vector.load %arg3[%c0_1, %c0_2] : memref<128x128xf32, #tpu.memory_space<vmem>>, vector<128x128xf32>
    %cst = arith.constant dense<0.000000e+00> : vector<128x128xf32>
    %2 = tpu.matmul %0, %1, %cst {dimension_numbers = #tpu.dot_dimension_numbers<[1], [0], [0], [1], [0, 0, 1, 1], [], []>} : vector<128x128xf32>, vector<128x128xf32>, vector<128x128xf32> -> vector<128x128xf32>
    %c0_3 = arith.constant 0 : index
    %c0_4 = arith.constant 0 : index
    %3 = vector.load %arg4[%c0_3, %c0_4] : memref<1x128xf32, #tpu.memory_space<vmem>>, vector<1x128xf32>
    %4 = vector.broadcast %3 : vector<1x128xf32> to vector<128x128xf32>
    %5 = arith.addf %2, %4 : vector<128x128xf32>
    %cst_5 = arith.constant 0.000000e+00 : f32
    %6 = vector.broadcast %cst_5 : f32 to vector<128x128xf32>
    %7 = arith.maximumf %5, %6 : vector<128x128xf32>
    %c0_6 = arith.constant 0 : index
    %c0_7 = arith.constant 0 : index
    %8 = vector.load %arg5[%c0_6, %c0_7] : memref<128x128xf32, #tpu.memory_space<vmem>>, vector<128x128xf32>
    %cst_8 = arith.constant dense<0.000000e+00> : vector<128x128xf32>
    %9 = tpu.matmul %7, %8, %cst_8 {dimension_numbers = #tpu.dot_dimension_numbers<[1], [0], [0], [1], [0, 0, 1, 1], [], []>} : vector<128x128xf32>, vector<128x128xf32>, vector<128x128xf32> -> vector<128x128xf32>
    %c0_9 = arith.constant 0 : index
    %c0_10 = arith.constant 0 : index
    %10 = vector.load %arg6[%c0_9, %c0_10] : memref<1x128xf32, #tpu.memory_space<vmem>>, vector<1x128xf32>
    %11 = vector.broadcast %10 : vector<1x128xf32> to vector<128x128xf32>
    %12 = arith.addf %9, %11 : vector<128x128xf32>
    %cst_11 = arith.constant 0.000000e+00 : f32
    %13 = vector.broadcast %cst_11 : f32 to vector<128x128xf32>
    %14 = arith.maximumf %12, %13 : vector<128x128xf32>
    %c0_12 = arith.constant 0 : index
    %c0_13 = arith.constant 0 : index
    %15 = vector.load %arg7[%c0_12, %c0_13] : memref<128x256xf32, #tpu.memory_space<vmem>>, vector<128x256xf32>
    %cst_14 = arith.constant dense<0.000000e+00> : vector<128x256xf32>
    %16 = tpu.matmul %14, %15, %cst_14 {dimension_numbers = #tpu.dot_dimension_numbers<[1], [0], [0], [1], [0, 0, 1, 1], [], []>} : vector<128x128xf32>, vector<128x256xf32>, vector<128x256xf32> -> vector<128x256xf32>
    %c0_15 = arith.constant 0 : index
    %c0_16 = arith.constant 0 : index
    %17 = vector.load %arg8[%c0_15, %c0_16] : memref<1x256xf32, #tpu.memory_space<vmem>>, vector<1x256xf32>
    %18 = vector.broadcast %17 : vector<1x256xf32> to vector<128x256xf32>
    %19 = arith.addf %16, %18 : vector<128x256xf32>
    %20 = vector.extract_strided_slice %19 {offsets = [0, 0], sizes = [128, 128], strides = [1, 1]} : vector<128x256xf32> to vector<128x128xf32>
    %21 = vector.extract_strided_slice %19 {offsets = [0, 128], sizes = [128, 128], strides = [1, 1]} : vector<128x256xf32> to vector<128x128xf32>
    %cst_17 = arith.constant 5.000000e-01 : f32
    %22 = vector.broadcast %cst_17 : f32 to vector<128x128xf32>
    %23 = arith.mulf %22, %21 : vector<128x128xf32>
    %24 = math.exp %23 : vector<128x128xf32>
    %c0_18 = arith.constant 0 : index
    %c0_19 = arith.constant 0 : index
    %25 = vector.load %arg2[%c0_18, %c0_19] : memref<128x128xf32, #tpu.memory_space<vmem>>, vector<128x128xf32>
    %26 = arith.mulf %25, %24 : vector<128x128xf32>
    %27 = arith.addf %20, %26 : vector<128x128xf32>
    %c0_20 = arith.constant 0 : index
    %c0_21 = arith.constant 0 : index
    %28 = vector.load %arg9[%c0_20, %c0_21] : memref<128x128xf32, #tpu.memory_space<vmem>>, vector<128x128xf32>
    %cst_22 = arith.constant dense<0.000000e+00> : vector<128x128xf32>
    %29 = tpu.matmul %27, %28, %cst_22 {dimension_numbers = #tpu.dot_dimension_numbers<[1], [0], [0], [1], [0, 0, 1, 1], [], []>} : vector<128x128xf32>, vector<128x128xf32>, vector<128x128xf32> -> vector<128x128xf32>
    %c0_23 = arith.constant 0 : index
    %c0_24 = arith.constant 0 : index
    %30 = vector.load %arg10[%c0_23, %c0_24] : memref<1x128xf32, #tpu.memory_space<vmem>>, vector<1x128xf32>
    %31 = vector.broadcast %30 : vector<1x128xf32> to vector<128x128xf32>
    %32 = arith.addf %29, %31 : vector<128x128xf32>
    %cst_25 = arith.constant 0.000000e+00 : f32
    %33 = vector.broadcast %cst_25 : f32 to vector<128x128xf32>
    %34 = arith.maximumf %32, %33 : vector<128x128xf32>
    %c0_26 = arith.constant 0 : index
    %c0_27 = arith.constant 0 : index
    %35 = vector.load %arg11[%c0_26, %c0_27] : memref<128x128xf32, #tpu.memory_space<vmem>>, vector<128x128xf32>
    %cst_28 = arith.constant dense<0.000000e+00> : vector<128x128xf32>
    %36 = tpu.matmul %34, %35, %cst_28 {dimension_numbers = #tpu.dot_dimension_numbers<[1], [0], [0], [1], [0, 0, 1, 1], [], []>} : vector<128x128xf32>, vector<128x128xf32>, vector<128x128xf32> -> vector<128x128xf32>
    %c0_29 = arith.constant 0 : index
    %c0_30 = arith.constant 0 : index
    %37 = vector.load %arg12[%c0_29, %c0_30] : memref<1x128xf32, #tpu.memory_space<vmem>>, vector<1x128xf32>
    %38 = vector.broadcast %37 : vector<1x128xf32> to vector<128x128xf32>
    %39 = arith.addf %36, %38 : vector<128x128xf32>
    %cst_31 = arith.constant 0.000000e+00 : f32
    %40 = vector.broadcast %cst_31 : f32 to vector<128x128xf32>
    %41 = arith.maximumf %39, %40 : vector<128x128xf32>
    %c0_32 = arith.constant 0 : index
    %c0_33 = arith.constant 0 : index
    %42 = vector.load %arg13[%c0_32, %c0_33] : memref<128x128xf32, #tpu.memory_space<vmem>>, vector<128x128xf32>
    %cst_34 = arith.constant dense<0.000000e+00> : vector<128x128xf32>
    %43 = tpu.matmul %41, %42, %cst_34 {dimension_numbers = #tpu.dot_dimension_numbers<[1], [0], [0], [1], [0, 0, 1, 1], [], []>} : vector<128x128xf32>, vector<128x128xf32>, vector<128x128xf32> -> vector<128x128xf32>
    %c0_35 = arith.constant 0 : index
    %c0_36 = arith.constant 0 : index
    %44 = vector.load %arg14[%c0_35, %c0_36] : memref<1x128xf32, #tpu.memory_space<vmem>>, vector<1x128xf32>
    %45 = vector.broadcast %44 : vector<1x128xf32> to vector<128x128xf32>
    %46 = arith.addf %43, %45 : vector<128x128xf32>
    %c0_37 = arith.constant 0 : index
    %c0_38 = arith.constant 0 : index
    %47 = vector.load %arg15[%c0_37, %c0_38] : memref<128x128xf32, #tpu.memory_space<vmem>>, vector<128x128xf32>
    tpu.vector_store %arg15[%c0_37, %c0_38], %46 {strides = array<i32>} : memref<128x128xf32, #tpu.memory_space<vmem>>, vector<128x128xf32>,
    %c0_39 = arith.constant 0 : index
    %c0_40 = arith.constant 0 : index
    %48 = vector.load %arg16[%c0_39, %c0_40] : memref<128x128xf32, #tpu.memory_space<vmem>>, vector<128x128xf32>
    tpu.vector_store %arg16[%c0_39, %c0_40], %20 {strides = array<i32>} : memref<128x128xf32, #tpu.memory_space<vmem>>, vector<128x128xf32>,
    %c0_41 = arith.constant 0 : index
    %c0_42 = arith.constant 0 : index
    %49 = vector.load %arg17[%c0_41, %c0_42] : memref<128x128xf32, #tpu.memory_space<vmem>>, vector<128x128xf32>
    tpu.vector_store %arg17[%c0_41, %c0_42], %21 {strides = array<i32>} : memref<128x128xf32, #tpu.memory_space<vmem>>, vector<128x128xf32>,
    return
  }
  func.func @transform_0(%arg0: i32) -> (i32, i32) {
    %c0_i32 = arith.constant 0 : i32
    %c0_i32_0 = arith.constant 0 : i32
    return %arg0, %c0_i32 : i32, i32
  }
  func.func @transform_1(%arg0: i32) -> (i32, i32) {
    %c0_i32 = arith.constant 0 : i32
    %c0_i32_0 = arith.constant 0 : i32
    return %arg0, %c0_i32 : i32, i32
  }
  func.func @transform_2(%arg0: i32) -> (i32, i32) {
    %c0_i32 = arith.constant 0 : i32
    %c0_i32_0 = arith.constant 0 : i32
    %c0_i32_1 = arith.constant 0 : i32
    return %c0_i32, %c0_i32_0 : i32, i32
  }
  func.func @transform_3(%arg0: i32) -> (i32, i32) {
    %c0_i32 = arith.constant 0 : i32
    %c0_i32_0 = arith.constant 0 : i32
    %c0_i32_1 = arith.constant 0 : i32
    return %c0_i32, %c0_i32_0 : i32, i32
  }
  func.func @transform_4(%arg0: i32) -> (i32, i32) {
    %c0_i32 = arith.constant 0 : i32
    %c0_i32_0 = arith.constant 0 : i32
    %c0_i32_1 = arith.constant 0 : i32
    return %c0_i32, %c0_i32_0 : i32, i32
  }
  func.func @transform_5(%arg0: i32) -> (i32, i32) {
    %c0_i32 = arith.constant 0 : i32
    %c0_i32_0 = arith.constant 0 : i32
    %c0_i32_1 = arith.constant 0 : i32
    return %c0_i32, %c0_i32_0 : i32, i32
  }
  func.func @transform_6(%arg0: i32) -> (i32, i32) {
    %c0_i32 = arith.constant 0 : i32
    %c0_i32_0 = arith.constant 0 : i32
    %c0_i32_1 = arith.constant 0 : i32
    return %c0_i32, %c0_i32_0 : i32, i32
  }
  func.func @transform_7(%arg0: i32) -> (i32, i32) {
    %c0_i32 = arith.constant 0 : i32
    %c0_i32_0 = arith.constant 0 : i32
    %c0_i32_1 = arith.constant 0 : i32
    return %c0_i32, %c0_i32_0 : i32, i32
  }
  func.func @transform_8(%arg0: i32) -> (i32, i32) {
    %c0_i32 = arith.constant 0 : i32
    %c0_i32_0 = arith.constant 0 : i32
    %c0_i32_1 = arith.constant 0 : i32
    return %c0_i32, %c0_i32_0 : i32, i32
  }
  func.func @transform_9(%arg0: i32) -> (i32, i32) {
    %c0_i32 = arith.constant 0 : i32
    %c0_i32_0 = arith.constant 0 : i32
    %c0_i32_1 = arith.constant 0 : i32
    return %c0_i32, %c0_i32_0 : i32, i32
  }
  func.func @transform_10(%arg0: i32) -> (i32, i32) {
    %c0_i32 = arith.constant 0 : i32
    %c0_i32_0 = arith.constant 0 : i32
    %c0_i32_1 = arith.constant 0 : i32
    return %c0_i32, %c0_i32_0 : i32, i32
  }
  func.func @transform_11(%arg0: i32) -> (i32, i32) {
    %c0_i32 = arith.constant 0 : i32
    %c0_i32_0 = arith.constant 0 : i32
    %c0_i32_1 = arith.constant 0 : i32
    return %c0_i32, %c0_i32_0 : i32, i32
  }
  func.func @transform_12(%arg0: i32) -> (i32, i32) {
    %c0_i32 = arith.constant 0 : i32
    %c0_i32_0 = arith.constant 0 : i32
    %c0_i32_1 = arith.constant 0 : i32
    return %c0_i32, %c0_i32_0 : i32, i32
  }
  func.func @transform_13(%arg0: i32) -> (i32, i32) {
    %c0_i32 = arith.constant 0 : i32
    %c0_i32_0 = arith.constant 0 : i32
    %c0_i32_1 = arith.constant 0 : i32
    return %c0_i32, %c0_i32_0 : i32, i32
  }
  func.func @transform_14(%arg0: i32) -> (i32, i32) {
    %c0_i32 = arith.constant 0 : i32
    %c0_i32_0 = arith.constant 0 : i32
    return %arg0, %c0_i32 : i32, i32
  }
  func.func @transform_15(%arg0: i32) -> (i32, i32) {
    %c0_i32 = arith.constant 0 : i32
    %c0_i32_0 = arith.constant 0 : i32
    return %arg0, %c0_i32 : i32, i32
  }
  func.func @transform_16(%arg0: i32) -> (i32, i32) {
    %c0_i32 = arith.constant 0 : i32
    %c0_i32_0 = arith.constant 0 : i32
    return %arg0, %c0_i32 : i32, i32
  }
}

</mosaic_0001>

<llo_original>
// kernel: tpu_custom_call.1
$region0: #{tpu_custom_call.1}
  #allocation0 [shape = 'u32[]', space=smem, size = 0x4, offset = 0x4, fixed_abs, tag = 'smem constant byte address 0x4 - core index']
  #allocation1 [shape = 'u32[72,128]{1,0:T(1,128)}', space=vmem, size = 0x9000, scoped, tag = 'internal scratch']
  %s0 = inlined_call_operand.hbm [shape: f32[256,128], index: 0, kind: input, shape index: {}]
  %s1 = inlined_call_operand.hbm [shape: f32[256,128], index: 1, kind: input, shape index: {}]
  %s2 = inlined_call_operand.hbm [shape: f32[128,128], index: 2, kind: input, shape index: {}]
  %s3 = inlined_call_operand.vmem [shape: f32[1,128], index: 3, kind: input, shape index: {}]
  %s4 = inlined_call_operand.hbm [shape: f32[128,128], index: 4, kind: input, shape index: {}]
  %s5 = inlined_call_operand.vmem [shape: f32[1,128], index: 5, kind: input, shape index: {}]
  %s6 = inlined_call_operand.hbm [shape: f32[128,256], index: 6, kind: input, shape index: {}]
  %s7 = inlined_call_operand.vmem [shape: f32[1,256], index: 7, kind: input, shape index: {}]
  %s8 = inlined_call_operand.hbm [shape: f32[128,128], index: 8, kind: input, shape index: {}]
  %s9 = inlined_call_operand.vmem [shape: f32[1,128], index: 9, kind: input, shape index: {}]
  %s10 = inlined_call_operand.hbm [shape: f32[128,128], index: 10, kind: input, shape index: {}]
  %s11 = inlined_call_operand.vmem [shape: f32[1,128], index: 11, kind: input, shape index: {}]
  %s12 = inlined_call_operand.hbm [shape: f32[128,128], index: 12, kind: input, shape index: {}]
  %s13 = inlined_call_operand.vmem [shape: f32[1,128], index: 13, kind: input, shape index: {}]
  %s14 = inlined_call_operand.hbm [shape: f32[256,128], index: 14, kind: output, shape index: {0}]
  %s15 = inlined_call_operand.hbm [shape: f32[256,128], index: 15, kind: output, shape index: {1}]
  %s16 = inlined_call_operand.hbm [shape: f32[256,128], index: 16, kind: output, shape index: {2}]
  %17 = xla_tuple %s14, %s15, %s16
  %s18 = sld [smem:[#allocation0]]
  $region137: #{tpu_custom_call.1} parent=0
    _
  %s20 = ssub.s32 1, %s18
  %s21 = scalar_select 0, %s20, %s18
  $region1: #{tpu_custom_call.1} parent=0
    #allocation2 [shape = 'u8[131072]{0}', space=vmem, size = 0x20000, scoped, tag = 'input window, operand 0']
    #allocation3 [shape = 's32[2]{0}', space=sflag, size = 0x8, scoped, tag = 'scoped memory for tpu_custom_call.1']
    #allocation4 [shape = 's32[2]{0}', space=sflag, size = 0x8, scoped, tag = 'scoped memory for tpu_custom_call.1']
    #allocation5 [shape = 'u8[131072]{0}', space=vmem, size = 0x20000, scoped, tag = 'input window, operand 1']
    #allocation6 [shape = 's32[2]{0}', space=sflag, size = 0x8, scoped, tag = 'scoped memory for tpu_custom_call.1']
    #allocation7 [shape = 'u8[65536]{0}', space=vmem, size = 0x10000, scoped, tag = 'input window, operand 2, single buffered']
    #allocation8 [shape = 'u8[65536]{0}', space=vmem, size = 0x10000, scoped, tag = 'input window, operand 4, single buffered']
    #allocation9 [shape = 's32[1]{0}', space=sflag, size = 0x4, scoped, tag = 'scoped memory for tpu_custom_call.1']
    #allocation10 [shape = 'u8[131072]{0}', space=vmem, size = 0x20000, scoped, tag = 'input window, operand 6, single buffered']
    #allocation11 [shape = 'u8[65536]{0}', space=vmem, size = 0x10000, scoped, tag = 'input window, operand 8, single buffered']
    #allocation12 [shape = 's32[1]{0}', space=sflag, size = 0x4, scoped, tag = 'scoped memory for tpu_custom_call.1']
    #allocation13 [shape = 'u8[65536]{0}', space=vmem, size = 0x10000, scoped, tag = 'input window, operand 10, single buffered']
    #allocation14 [shape = 'u8[65536]{0}', space=vmem, size = 0x10000, scoped, tag = 'input window, operand 12, single buffered']
    #allocation15 [shape = 's32[1]{0}', space=sflag, size = 0x4, scoped, tag = 'scoped memory for tpu_custom_call.1']
    #allocation16 [shape = 'u8[131072]{0}', space=vmem, size = 0x20000, scoped, tag = 'output window, operand 0']
    #allocation17 [shape = 'u8[131072]{0}', space=vmem, size = 0x20000, scoped, tag = 'output window, operand 1']
    #allocation18 [shape = 's32[2]{0}', space=sflag, size = 0x8, scoped, tag = 'scoped memory for tpu_custom_call.1']
    #allocation19 [shape = 'u8[131072]{0}', space=vmem, size = 0x20000, scoped, tag = 'output window, operand 2']
    %22 = vsyncpa [#allocation3], 0
    %s23 = scalar_lea.sflag [#allocation3], 1
    %24 = vsyncpa %s23, 0
    %25 = vsyncpa [#allocation6], 0
    %s26 = scalar_lea.sflag [#allocation6], 1
    %27 = vsyncpa %s26, 0
    %28 = vsyncpa [#allocation9], 0
    %29 = vsyncpa [#allocation12], 0
    %30 = vsyncpa [#allocation15], 0
    %31 = vsyncpa [#allocation4], 0
    %s32 = scalar_lea.sflag [#allocation4], 1
    %33 = vsyncpa %s32, 0
    %34 = vsyncpa [#allocation18], 0
    %s35 = scalar_lea.sflag [#allocation18], 1
    %36 = vsyncpa %s35, 0
    loop: start=0, step=1, limit=4
    $region2: #{tpu_custom_call.1} parent=1 // loop_pre_header
      _
    $region3: #{tpu_custom_call.1} parent=1 // loop_header
      %s38 = sphi 0, %s42
      %p39 = scmp.ge.s32.totalorder %s38, 4
      %s48 = sphi 0, %s50
      %s51 = sphi 0, %s48
      %s52 = sphi 0, %s51
      %s68 = sphi 0, %s52
      %s74 = sphi 0, %s76
      %s77 = sphi 0, %s74
      %s78 = sphi 0, %s77
      %s94 = sphi 0, %s78
      %s98 = sphi 0, %s98
      %s100 = sphi 0, %s98
      %s101 = sphi 0, %s100
      %s115 = sphi 0, %s101
      %s119 = sphi 0, %s119
      %s121 = sphi 0, %s119
      %s122 = sphi 0, %s121
      %s136 = sphi 0, %s122
      %s140 = sphi 0, %s140
      %s142 = sphi 0, %s140
      %s143 = sphi 0, %s142
      %s157 = sphi 0, %s143
      %s161 = sphi 0, %s161
      %s163 = sphi 0, %s161
      %s164 = sphi 0, %s163
      %s178 = sphi 0, %s164
      %s182 = sphi 0, %s182
      %s184 = sphi 0, %s182
      %s185 = sphi 0, %s184
      %s199 = sphi 0, %s185
      %s203 = sphi 0, %s203
      %s205 = sphi 0, %s203
      %s206 = sphi 0, %s205
      %s220 = sphi 0, %s206
      %s224 = sphi 0, %s224
      %s226 = sphi 0, %s224
      %s227 = sphi 0, %s226
      %s241 = sphi 0, %s227
      %s245 = sphi 0, %s245
      %s247 = sphi 0, %s245
      %s248 = sphi 0, %s247
      %s262 = sphi 0, %s248
      %s266 = sphi 0, %s266
      %s268 = sphi 0, %s266
      %s269 = sphi 0, %s268
      %s283 = sphi 0, %s269
      %s287 = sphi 0, %s287
      %s289 = sphi 0, %s287
      %s290 = sphi 0, %s289
      %s304 = sphi 0, %s290
      %s308 = sphi 0, %s308
      %s310 = sphi 0, %s308
      %s311 = sphi 0, %s310
      %s325 = sphi 0, %s311
      %s329 = sphi 0, %s329
      %s331 = sphi 0, %s329
      %s332 = sphi 0, %s331
      %s346 = sphi 0, %s332
      %s352 = sphi 0, %s354
      %s355 = sphi 0, %s352
      %s356 = sphi 0, %s355
      %s372 = sphi 0, %s356
      %s378 = sphi 0, %s380
      %s381 = sphi 0, %s378
      %s382 = sphi 0, %s381
      %s398 = sphi 0, %s382
      %s404 = sphi 0, %s406
      %s407 = sphi 0, %s404
      %s408 = sphi 0, %s407
      %s424 = sphi 0, %s408
    $region4: #{tpu_custom_call.1} parent=1 // loop_header_branch
      %41 = sbr.rel (%p39) target = $region8
    $region5: #{tpu_custom_call.1} parent=1 // loop_body
      %s43 = ssub.s32 %s38, 1
      %s44 = ssub.s32 %s38, 2
      %s45 = sadd.s32 %s38, 1
      %s46 = ssub.s32 %s38, %s45
      %p47 = scmp.eq.s32.totalorder %s46, 0
      %s49 = sadd.s32 %s48, 1
      %s50 = scalar_select %p47, %s48, %s49
      %p53 = pneg %p47
      %p54 = scmp.eq.s32.totalorder %s38, 1
      %p55 = por %p53, %p54
      %p56 = scmp.ne.s32.totalorder %s48, %s51
      %p57 = scmp.eq.s32.totalorder %s38, 0
      %p58 = por %p56, %p57
      %p59 = scmp.ne.s32.totalorder %s48, %s51
      %p60 = scmp.eq.s32.totalorder %s43, 1
      %p61 = por %p59, %p60
      %p62 = scmp.ne.s32.totalorder %s51, %s52
      %p63 = scmp.eq.s32.totalorder %s43, 0
      %p64 = por %p62, %p63
      %p65 = scmp.ne.s32.totalorder %s51, %s52
      %p66 = scmp.eq.s32.totalorder %s44, 1
      %p67 = por %p65, %p66
      %p69 = scmp.ne.s32.totalorder %s52, %s68
      %p70 = scmp.eq.s32.totalorder %s44, 0
      %p71 = por %p69, %p70
      %s72 = ssub.s32 %s38, %s45
      %p73 = scmp.eq.s32.totalorder %s72, 0
      %s75 = sadd.s32 %s74, 1
      %s76 = scalar_select %p73, %s74, %s75
      %p79 = pneg %p73
      %p80 = scmp.eq.s32.totalorder %s38, 1
      %p81 = por %p79, %p80
      %p82 = scmp.ne.s32.totalorder %s74, %s77
      %p83 = scmp.eq.s32.totalorder %s38, 0
      %p84 = por %p82, %p83
      %p85 = scmp.ne.s32.totalorder %s74, %s77
      %p86 = scmp.eq.s32.totalorder %s43, 1
      %p87 = por %p85, %p86
      %p88 = scmp.ne.s32.totalorder %s77, %s78
      %p89 = scmp.eq.s32.totalorder %s43, 0
      %p90 = por %p88, %p89
      %p91 = scmp.ne.s32.totalorder %s77, %s78
      %p92 = scmp.eq.s32.totalorder %s44, 1
      %p93 = por %p91, %p92
      %p95 = scmp.ne.s32.totalorder %s78, %s94
      %p96 = scmp.eq.s32.totalorder %s44, 0
      %p97 = por %p95, %p96
      %s99 = sadd.s32 %s98, 1
      %p102 = scmp.eq.s32.totalorder %s38, 1
      %p103 = scmp.ne.s32.totalorder %s98, %s100
      %p104 = scmp.eq.s32.totalorder %s38, 0
      %p105 = por %p103, %p104
      %p106 = scmp.ne.s32.totalorder %s98, %s100
      %p107 = scmp.eq.s32.totalorder %s43, 1
      %p108 = por %p106, %p107
      %p109 = scmp.ne.s32.totalorder %s100, %s101
      %p110 = scmp.eq.s32.totalorder %s43, 0
      %p111 = por %p109, %p110
      %p112 = scmp.ne.s32.totalorder %s100, %s101
      %p113 = scmp.eq.s32.totalorder %s44, 1
      %p114 = por %p112, %p113
      %p116 = scmp.ne.s32.totalorder %s101, %s115
      %p117 = scmp.eq.s32.totalorder %s44, 0
      %p118 = por %p116, %p117
      %s120 = sadd.s32 %s119, 1
      %p123 = scmp.eq.s32.totalorder %s38, 1
      %p124 = scmp.ne.s32.totalorder %s119, %s121
      %p125 = scmp.eq.s32.totalorder %s38, 0
      %p126 = por %p124, %p125
      %p127 = scmp.ne.s32.totalorder %s119, %s121
      %p128 = scmp.eq.s32.totalorder %s43, 1
      %p129 = por %p127, %p128
      %p130 = scmp.ne.s32.totalorder %s121, %s122
      %p131 = scmp.eq.s32.totalorder %s43, 0
      %p132 = por %p130, %p131
      %p133 = scmp.ne.s32.totalorder %s121, %s122
      %p134 = scmp.eq.s32.totalorder %s44, 1
      %p135 = por %p133, %p134
      %p137 = scmp.ne.s32.totalorder %s122, %s136
      %p138 = scmp.eq.s32.totalorder %s44, 0
      %p139 = por %p137, %p138
      %s141 = sadd.s32 %s140, 1
      %p144 = scmp.eq.s32.totalorder %s38, 1
      %p145 = scmp.ne.s32.totalorder %s140, %s142
      %p146 = scmp.eq.s32.totalorder %s38, 0
      %p147 = por %p145, %p146
      %p148 = scmp.ne.s32.totalorder %s140, %s142
      %p149 = scmp.eq.s32.totalorder %s43, 1
      %p150 = por %p148, %p149
      %p151 = scmp.ne.s32.totalorder %s142, %s143
      %p152 = scmp.eq.s32.totalorder %s43, 0
      %p153 = por %p151, %p152
      %p154 = scmp.ne.s32.totalorder %s142, %s143
      %p155 = scmp.eq.s32.totalorder %s44, 1
      %p156 = por %p154, %p155
      %p158 = scmp.ne.s32.totalorder %s143, %s157
      %p159 = scmp.eq.s32.totalorder %s44, 0
      %p160 = por %p158, %p159
      %s162 = sadd.s32 %s161, 1
      %p165 = scmp.eq.s32.totalorder %s38, 1
      %p166 = scmp.ne.s32.totalorder %s161, %s163
      %p167 = scmp.eq.s32.totalorder %s38, 0
      %p168 = por %p166, %p167
      %p169 = scmp.ne.s32.totalorder %s161, %s163
      %p170 = scmp.eq.s32.totalorder %s43, 1
      %p171 = por %p169, %p170
      %p172 = scmp.ne.s32.totalorder %s163, %s164
      %p173 = scmp.eq.s32.totalorder %s43, 0
      %p174 = por %p172, %p173
      %p175 = scmp.ne.s32.totalorder %s163, %s164
      %p176 = scmp.eq.s32.totalorder %s44, 1
      %p177 = por %p175, %p176
      %p179 = scmp.ne.s32.totalorder %s164, %s178
      %p180 = scmp.eq.s32.totalorder %s44, 0
      %p181 = por %p179, %p180
      %s183 = sadd.s32 %s182, 1
      %p186 = scmp.eq.s32.totalorder %s38, 1
      %p187 = scmp.ne.s32.totalorder %s182, %s184
      %p188 = scmp.eq.s32.totalorder %s38, 0
      %p189 = por %p187, %p188
      %p190 = scmp.ne.s32.totalorder %s182, %s184
      %p191 = scmp.eq.s32.totalorder %s43, 1
      %p192 = por %p190, %p191
      %p193 = scmp.ne.s32.totalorder %s184, %s185
      %p194 = scmp.eq.s32.totalorder %s43, 0
      %p195 = por %p193, %p194
      %p196 = scmp.ne.s32.totalorder %s184, %s185
      %p197 = scmp.eq.s32.totalorder %s44, 1
      %p198 = por %p196, %p197
      %p200 = scmp.ne.s32.totalorder %s185, %s199
      %p201 = scmp.eq.s32.totalorder %s44, 0
      %p202 = por %p200, %p201
      %s204 = sadd.s32 %s203, 1
      %p207 = scmp.eq.s32.totalorder %s38, 1
      %p208 = scmp.ne.s32.totalorder %s203, %s205
      %p209 = scmp.eq.s32.totalorder %s38, 0
      %p210 = por %p208, %p209
      %p211 = scmp.ne.s32.totalorder %s203, %s205
      %p212 = scmp.eq.s32.totalorder %s43, 1
      %p213 = por %p211, %p212
      %p214 = scmp.ne.s32.totalorder %s205, %s206
      %p215 = scmp.eq.s32.totalorder %s43, 0
      %p216 = por %p214, %p215
      %p217 = scmp.ne.s32.totalorder %s205, %s206
      %p218 = scmp.eq.s32.totalorder %s44, 1
      %p219 = por %p217, %p218
      %p221 = scmp.ne.s32.totalorder %s206, %s220
      %p222 = scmp.eq.s32.totalorder %s44, 0
      %p223 = por %p221, %p222
      %s225 = sadd.s32 %s224, 1
      %p228 = scmp.eq.s32.totalorder %s38, 1
      %p229 = scmp.ne.s32.totalorder %s224, %s226
      %p230 = scmp.eq.s32.totalorder %s38, 0
      %p231 = por %p229, %p230
      %p232 = scmp.ne.s32.totalorder %s224, %s226
      %p233 = scmp.eq.s32.totalorder %s43, 1
      %p234 = por %p232, %p233
      %p235 = scmp.ne.s32.totalorder %s226, %s227
      %p236 = scmp.eq.s32.totalorder %s43, 0
      %p237 = por %p235, %p236
      %p238 = scmp.ne.s32.totalorder %s226, %s227
      %p239 = scmp.eq.s32.totalorder %s44, 1
      %p240 = por %p238, %p239
      %p242 = scmp.ne.s32.totalorder %s227, %s241
      %p243 = scmp.eq.s32.totalorder %s44, 0
      %p244 = por %p242, %p243
      %s246 = sadd.s32 %s245, 1
      %p249 = scmp.eq.s32.totalorder %s38, 1
      %p250 = scmp.ne.s32.totalorder %s245, %s247
      %p251 = scmp.eq.s32.totalorder %s38, 0
      %p252 = por %p250, %p251
      %p253 = scmp.ne.s32.totalorder %s245, %s247
      %p254 = scmp.eq.s32.totalorder %s43, 1
      %p255 = por %p253, %p254
      %p256 = scmp.ne.s32.totalorder %s247, %s248
      %p257 = scmp.eq.s32.totalorder %s43, 0
      %p258 = por %p256, %p257
      %p259 = scmp.ne.s32.totalorder %s247, %s248
      %p260 = scmp.eq.s32.totalorder %s44, 1
      %p261 = por %p259, %p260
      %p263 = scmp.ne.s32.totalorder %s248, %s262
      %p264 = scmp.eq.s32.totalorder %s44, 0
      %p265 = por %p263, %p264
      %s267 = sadd.s32 %s266, 1
      %p270 = scmp.eq.s32.totalorder %s38, 1
      %p271 = scmp.ne.s32.totalorder %s266, %s268
      %p272 = scmp.eq.s32.totalorder %s38, 0
      %p273 = por %p271, %p272
      %p274 = scmp.ne.s32.totalorder %s266, %s268
      %p275 = scmp.eq.s32.totalorder %s43, 1
      %p276 = por %p274, %p275
      %p277 = scmp.ne.s32.totalorder %s268, %s269
      %p278 = scmp.eq.s32.totalorder %s43, 0
      %p279 = por %p277, %p278
      %p280 = scmp.ne.s32.totalorder %s268, %s269
      %p281 = scmp.eq.s32.totalorder %s44, 1
      %p282 = por %p280, %p281
      %p284 = scmp.ne.s32.totalorder %s269, %s283
      %p285 = scmp.eq.s32.totalorder %s44, 0
      %p286 = por %p284, %p285
      %s288 = sadd.s32 %s287, 1
      %p291 = scmp.eq.s32.totalorder %s38, 1
      %p292 = scmp.ne.s32.totalorder %s287, %s289
      %p293 = scmp.eq.s32.totalorder %s38, 0
      %p294 = por %p292, %p293
      %p295 = scmp.ne.s32.totalorder %s287, %s289
      %p296 = scmp.eq.s32.totalorder %s43, 1
      %p297 = por %p295, %p296
      %p298 = scmp.ne.s32.totalorder %s289, %s290
      %p299 = scmp.eq.s32.totalorder %s43, 0
      %p300 = por %p298, %p299
      %p301 = scmp.ne.s32.totalorder %s289, %s290
      %p302 = scmp.eq.s32.totalorder %s44, 1
      %p303 = por %p301, %p302
      %p305 = scmp.ne.s32.totalorder %s290, %s304
      %p306 = scmp.eq.s32.totalorder %s44, 0
      %p307 = por %p305, %p306
      %s309 = sadd.s32 %s308, 1
      %p312 = scmp.eq.s32.totalorder %s38, 1
      %p313 = scmp.ne.s32.totalorder %s308, %s310
      %p314 = scmp.eq.s32.totalorder %s38, 0
      %p315 = por %p313, %p314
      %p316 = scmp.ne.s32.totalorder %s308, %s310
      %p317 = scmp.eq.s32.totalorder %s43, 1
      %p318 = por %p316, %p317
      %p319 = scmp.ne.s32.totalorder %s310, %s311
      %p320 = scmp.eq.s32.totalorder %s43, 0
      %p321 = por %p319, %p320
      %p322 = scmp.ne.s32.totalorder %s310, %s311
      %p323 = scmp.eq.s32.totalorder %s44, 1
      %p324 = por %p322, %p323
      %p326 = scmp.ne.s32.totalorder %s311, %s325
      %p327 = scmp.eq.s32.totalorder %s44, 0
      %p328 = por %p326, %p327
      %s330 = sadd.s32 %s329, 1
      %p333 = scmp.eq.s32.totalorder %s38, 1
      %p334 = scmp.ne.s32.totalorder %s329, %s331
      %p335 = scmp.eq.s32.totalorder %s38, 0
      %p336 = por %p334, %p335
      %p337 = scmp.ne.s32.totalorder %s329, %s331
      %p338 = scmp.eq.s32.totalorder %s43, 1
      %p339 = por %p337, %p338
      %p340 = scmp.ne.s32.totalorder %s331, %s332
      %p341 = scmp.eq.s32.totalorder %s43, 0
      %p342 = por %p340, %p341
      %p343 = scmp.ne.s32.totalorder %s331, %s332
      %p344 = scmp.eq.s32.totalorder %s44, 1
      %p345 = por %p343, %p344
      %p347 = scmp.ne.s32.totalorder %s332, %s346
      %p348 = scmp.eq.s32.totalorder %s44, 0
      %p349 = por %p347, %p348
      %s350 = ssub.s32 %s38, %s45
      %p351 = scmp.eq.s32.totalorder %s350, 0
      %s353 = sadd.s32 %s352, 1
      %s354 = scalar_select %p351, %s352, %s353
      %p357 = pneg %p351
      %p358 = scmp.eq.s32.totalorder %s38, 1
      %p359 = por %p357, %p358
      %p360 = scmp.ne.s32.totalorder %s352, %s355
      %p361 = scmp.eq.s32.totalorder %s38, 0
      %p362 = por %p360, %p361
      %p363 = scmp.ne.s32.totalorder %s352, %s355
      %p364 = scmp.eq.s32.totalorder %s43, 1
      %p365 = por %p363, %p364
      %p366 = scmp.ne.s32.totalorder %s355, %s356
      %p367 = scmp.eq.s32.totalorder %s43, 0
      %p368 = por %p366, %p367
      %p369 = scmp.ne.s32.totalorder %s355, %s356
      %p370 = scmp.eq.s32.totalorder %s44, 1
      %p371 = por %p369, %p370
      %p373 = scmp.ne.s32.totalorder %s356, %s372
      %p374 = scmp.eq.s32.totalorder %s44, 0
      %p375 = por %p373, %p374
      %s376 = ssub.s32 %s38, %s45
      %p377 = scmp.eq.s32.totalorder %s376, 0
      %s379 = sadd.s32 %s378, 1
      %s380 = scalar_select %p377, %s378, %s379
      %p383 = pneg %p377
      %p384 = scmp.eq.s32.totalorder %s38, 1
      %p385 = por %p383, %p384
      %p386 = scmp.ne.s32.totalorder %s378, %s381
      %p387 = scmp.eq.s32.totalorder %s38, 0
      %p388 = por %p386, %p387
      %p389 = scmp.ne.s32.totalorder %s378, %s381
      %p390 = scmp.eq.s32.totalorder %s43, 1
      %p391 = por %p389, %p390
      %p392 = scmp.ne.s32.totalorder %s381, %s382
      %p393 = scmp.eq.s32.totalorder %s43, 0
      %p394 = por %p392, %p393
      %p395 = scmp.ne.s32.totalorder %s381, %s382
      %p396 = scmp.eq.s32.totalorder %s44, 1
      %p397 = por %p395, %p396
      %p399 = scmp.ne.s32.totalorder %s382, %s398
      %p400 = scmp.eq.s32.totalorder %s44, 0
      %p401 = por %p399, %p400
      %s402 = ssub.s32 %s38, %s45
      %p403 = scmp.eq.s32.totalorder %s402, 0
      %s405 = sadd.s32 %s404, 1
      %s406 = scalar_select %p403, %s404, %s405
      %p409 = pneg %p403
      %p410 = scmp.eq.s32.totalorder %s38, 1
      %p411 = por %p409, %p410
      %p412 = scmp.ne.s32.totalorder %s404, %s407
      %p413 = scmp.eq.s32.totalorder %s38, 0
      %p414 = por %p412, %p413
      %p415 = scmp.ne.s32.totalorder %s404, %s407
      %p416 = scmp.eq.s32.totalorder %s43, 1
      %p417 = por %p415, %p416
      %p418 = scmp.ne.s32.totalorder %s407, %s408
      %p419 = scmp.eq.s32.totalorder %s43, 0
      %p420 = por %p418, %p419
      %p421 = scmp.ne.s32.totalorder %s407, %s408
      %p422 = scmp.eq.s32.totalorder %s44, 1
      %p423 = por %p421, %p422
      %p425 = scmp.ne.s32.totalorder %s408, %s424
      %p426 = scmp.eq.s32.totalorder %s44, 0
      %p427 = por %p425, %p426
      %p428 = scmp.le.s32.totalorder 1, %s38
      %p429 = scmp.lt.s32.totalorder %s38, 3
      %p430 = pnand %p428, %p429
      %p431 = pneg %p430
      // Predicated region
      $region9: #{tpu_custom_call.1} parent=5 // pred_check
        _
      $region10: #{tpu_custom_call.1} parent=5 // pred_check_branch
        %433 = sbr.rel (%p430) target = $region12
      $region11: #{tpu_custom_call.1} parent=5 // pred_region
        %s434 = ssub.s32 %s38, 1
        // Predicated region
        $region13: #{tpu_custom_call.1} parent=11 // pred_check
          %p435 = pneg %p111
        $region14: #{tpu_custom_call.1} parent=11 // pred_check_branch
          %437 = sbr.rel (%p435) target = $region16
        $region15: #{tpu_custom_call.1} parent=11 // pred_region
          %439 = vsyncadd [#allocation6], 0
          %s440 = sshll.u32 %s2, 4
          %s441 = int_to_ptr.hbm [resolvable:$true] %s440
          %s442 = sshll.u32 [#allocation7], 4
          %s443 = int_to_ptr.vmem [resolvable:$true] %s442
          %448 = dma.hbm_to_vmem [thread:$0]  %s441, 2048, %s443, [#allocation6], 128, 128, 8
        $region16: #{tpu_custom_call.1} parent=11 // pred_fallthru
          _
        // Predicated region
        $region17: #{tpu_custom_call.1} parent=11 // pred_check
          %p449 = pneg %p132
        $region18: #{tpu_custom_call.1} parent=11 // pred_check_branch
          %451 = sbr.rel (%p449) target = $region20
        $region19: #{tpu_custom_call.1} parent=11 // pred_region
          _
        $region20: #{tpu_custom_call.1} parent=11 // pred_fallthru
          _
        // Predicated region
        $region21: #{tpu_custom_call.1} parent=11 // pred_check
          %p452 = pneg %p153
        $region22: #{tpu_custom_call.1} parent=11 // pred_check_branch
          %454 = sbr.rel (%p452) target = $region24
        $region23: #{tpu_custom_call.1} parent=11 // pred_region
          %456 = vsyncadd [#allocation9], 0
          %s457 = sshll.u32 %s4, 4
          %s458 = int_to_ptr.hbm [resolvable:$true] %s457
          %s459 = sshll.u32 [#allocation8], 4
          %s460 = int_to_ptr.vmem [resolvable:$true] %s459
          %465 = dma.hbm_to_vmem [thread:$0]  %s458, 2048, %s460, [#allocation9], 128, 128, 8
        $region24: #{tpu_custom_call.1} parent=11 // pred_fallthru
          _
        // Predicated region
        $region25: #{tpu_custom_call.1} parent=11 // pred_check
          %p466 = pneg %p174
        $region26: #{tpu_custom_call.1} parent=11 // pred_check_branch
          %468 = sbr.rel (%p466) target = $region28
        $region27: #{tpu_custom_call.1} parent=11 // pred_region
          _
        $region28: #{tpu_custom_call.1} parent=11 // pred_fallthru
          _
        // Predicated region
        $region29: #{tpu_custom_call.1} parent=11 // pred_check
          %p469 = pneg %p195
        $region30: #{tpu_custom_call.1} parent=11 // pred_check_branch
          %471 = sbr.rel (%p469) target = $region32
        $region31: #{tpu_custom_call.1} parent=11 // pred_region
          %473 = vsyncadd [#allocation9], 0
          %s474 = sshll.u32 %s6, 4
          %s475 = int_to_ptr.hbm [resolvable:$true] %s474
          %s476 = sshll.u32 [#allocation10], 4
          %s477 = int_to_ptr.vmem [resolvable:$true] %s476
          %482 = dma.hbm_to_vmem [thread:$0]  %s475, 4096, %s477, [#allocation9], 256, 256, 16
        $region32: #{tpu_custom_call.1} parent=11 // pred_fallthru
          _
        // Predicated region
        $region33: #{tpu_custom_call.1} parent=11 // pred_check
          %p483 = pneg %p216
        $region34: #{tpu_custom_call.1} parent=11 // pred_check_branch
          %485 = sbr.rel (%p483) target = $region36
        $region35: #{tpu_custom_call.1} parent=11 // pred_region
          _
        $region36: #{tpu_custom_call.1} parent=11 // pred_fallthru
          _
        // Predicated region
        $region37: #{tpu_custom_call.1} parent=11 // pred_check
          %p486 = pneg %p237
        $region38: #{tpu_custom_call.1} parent=11 // pred_check_branch
          %488 = sbr.rel (%p486) target = $region40
        $region39: #{tpu_custom_call.1} parent=11 // pred_region
          %490 = vsyncadd [#allocation12], 0
          %s491 = sshll.u32 %s8, 4
          %s492 = int_to_ptr.hbm [resolvable:$true] %s491
          %s493 = sshll.u32 [#allocation11], 4
          %s494 = int_to_ptr.vmem [resolvable:$true] %s493
          %499 = dma.hbm_to_vmem [thread:$0]  %s492, 2048, %s494, [#allocation12], 128, 128, 8
        $region40: #{tpu_custom_call.1} parent=11 // pred_fallthru
          _
        // Predicated region
        $region41: #{tpu_custom_call.1} parent=11 // pred_check
          %p500 = pneg %p258
        $region42: #{tpu_custom_call.1} parent=11 // pred_check_branch
          %502 = sbr.rel (%p500) target = $region44
        $region43: #{tpu_custom_call.1} parent=11 // pred_region
          _
        $region44: #{tpu_custom_call.1} parent=11 // pred_fallthru
          _
        // Predicated region
        $region45: #{tpu_custom_call.1} parent=11 // pred_check
          %p503 = pneg %p279
        $region46: #{tpu_custom_call.1} parent=11 // pred_check_branch
          %505 = sbr.rel (%p503) target = $region48
        $region47: #{tpu_custom_call.1} parent=11 // pred_region
          %507 = vsyncadd [#allocation12], 0
          %s508 = sshll.u32 %s10, 4
          %s509 = int_to_ptr.hbm [resolvable:$true] %s508
          %s510 = sshll.u32 [#allocation13], 4
          %s511 = int_to_ptr.vmem [resolvable:$true] %s510
          %516 = dma.hbm_to_vmem [thread:$0]  %s509, 2048, %s511, [#allocation12], 128, 128, 8
        $region48: #{tpu_custom_call.1} parent=11 // pred_fallthru
          _
        // Predicated region
        $region49: #{tpu_custom_call.1} parent=11 // pred_check
          %p517 = pneg %p300
        $region50: #{tpu_custom_call.1} parent=11 // pred_check_branch
          %519 = sbr.rel (%p517) target = $region52
        $region51: #{tpu_custom_call.1} parent=11 // pred_region
          _
        $region52: #{tpu_custom_call.1} parent=11 // pred_fallthru
          _
        // Predicated region
        $region53: #{tpu_custom_call.1} parent=11 // pred_check
          %p520 = pneg %p321
        $region54: #{tpu_custom_call.1} parent=11 // pred_check_branch
          %522 = sbr.rel (%p520) target = $region56
        $region55: #{tpu_custom_call.1} parent=11 // pred_region
          %524 = vsyncadd [#allocation15], 0
          %s525 = sshll.u32 %s12, 4
          %s526 = int_to_ptr.hbm [resolvable:$true] %s525
          %s527 = sshll.u32 [#allocation14], 4
          %s528 = int_to_ptr.vmem [resolvable:$true] %s527
          %533 = dma.hbm_to_vmem [thread:$0]  %s526, 2048, %s528, [#allocation15], 128, 128, 8
        $region56: #{tpu_custom_call.1} parent=11 // pred_fallthru
          _
        // Predicated region
        $region57: #{tpu_custom_call.1} parent=11 // pred_check
          %p534 = pneg %p342
        $region58: #{tpu_custom_call.1} parent=11 // pred_check_branch
          %536 = sbr.rel (%p534) target = $region60
        $region59: #{tpu_custom_call.1} parent=11 // pred_region
          _
        $region60: #{tpu_custom_call.1} parent=11 // pred_fallthru
          _
      $region12: #{tpu_custom_call.1} parent=5 // pred_fallthru
        _
      %p537 = scmp.lt.s32.totalorder %s38, 2
      // Predicated region
      $region61: #{tpu_custom_call.1} parent=5 // pred_check
        %p538 = pneg %p537
      $region62: #{tpu_custom_call.1} parent=5 // pred_check_branch
        %540 = sbr.rel (%p538) target = $region64
      $region63: #{tpu_custom_call.1} parent=5 // pred_region
        // Predicated region
        $region65: #{tpu_custom_call.1} parent=63 // pred_check
          %p541 = pneg %p58
        $region66: #{tpu_custom_call.1} parent=63 // pred_check_branch
          %543 = sbr.rel (%p541) target = $region68
        $region67: #{tpu_custom_call.1} parent=63 // pred_region
          %s544 = sand.u32 %s48, 1
          %s545 = scalar_lea.sflag [#allocation3], %s544
          %s546 = sand.u32 %s48, 1
          %s547 = smul.addr %s546, 128
          %s548 = scalar_lea.vmem [#allocation2], %s547
          %s549 = smul.u32 16, %s38
          %551 = vsyncadd %s545, 0
          %s552 = smul.addr %s549, 8
          %s553 = scalar_lea.hbm %s0, %s552
          %s554 = sshll.u32 %s553, 4
          %s555 = int_to_ptr.hbm [resolvable:$true] %s554
          %s556 = sshll.u32 %s548, 4
          %s557 = int_to_ptr.vmem [resolvable:$true] %s556
          %562 = dma.hbm_to_vmem [thread:$0]  %s555, 2048, %s557, %s545, 128, 128, 8
        $region68: #{tpu_custom_call.1} parent=63 // pred_fallthru
          _
        // Predicated region
        $region69: #{tpu_custom_call.1} parent=63 // pred_check
          %p563 = pneg %p84
        $region70: #{tpu_custom_call.1} parent=63 // pred_check_branch
          %565 = sbr.rel (%p563) target = $region72
        $region71: #{tpu_custom_call.1} parent=63 // pred_region
          %s566 = sand.u32 %s38, 1
          %s567 = scalar_lea.sflag [#allocation6], %s566
          %s568 = sand.u32 %s74, 1
          %s569 = smul.addr %s568, 128
          %s570 = scalar_lea.vmem [#allocation5], %s569
          %s571 = smul.u32 16, %s38
          %573 = vsyncadd %s567, 0
          %s574 = smul.addr %s571, 8
          %s575 = scalar_lea.hbm %s1, %s574
          %s576 = sshll.u32 %s575, 4
          %s577 = int_to_ptr.hbm [resolvable:$true] %s576
          %s578 = sshll.u32 %s570, 4
          %s579 = int_to_ptr.vmem [resolvable:$true] %s578
          %584 = dma.hbm_to_vmem [thread:$0]  %s577, 2048, %s579, %s567, 128, 128, 8
        $region72: #{tpu_custom_call.1} parent=63 // pred_fallthru
          _
      $region64: #{tpu_custom_call.1} parent=5 // pred_fallthru
        _
      %p585 = scmp.le.s32.totalorder 1, %s38
      %p586 = scmp.lt.s32.totalorder %s38, 3
      %p587 = pnand %p585, %p586
      %p588 = pneg %p587
      // Predicated region
      $region73: #{tpu_custom_call.1} parent=5 // pred_check
        _
      $region74: #{tpu_custom_call.1} parent=5 // pred_check_branch
        %590 = sbr.rel (%p587) target = $region76
      $region75: #{tpu_custom_call.1} parent=5 // pred_region
        %s591 = ssub.s32 %s38, 1
        %s592 = sand.u32 %s51, 1
        %s593 = scalar_lea.sflag [#allocation3], %s592
        %s594 = sand.u32 %s51, 1
        %s595 = smul.addr %s594, 128
        %s596 = scalar_lea.vmem [#allocation2], %s595
        // Predicated region
        $region77: #{tpu_custom_call.1} parent=75 // pred_check
          %p597 = pneg %p64
        $region78: #{tpu_custom_call.1} parent=75 // pred_check_branch
          %599 = sbr.rel (%p597) target = $region80
        $region79: #{tpu_custom_call.1} parent=75 // pred_region
          %601 = dma.done %s593, 2048
        $region80: #{tpu_custom_call.1} parent=75 // pred_fallthru
          _
        %s602 = sand.u32 %s43, 1
        %s603 = scalar_lea.sflag [#allocation6], %s602
        %s604 = sand.u32 %s77, 1
        %s605 = smul.addr %s604, 128
        %s606 = scalar_lea.vmem [#allocation5], %s605
        // Predicated region
        $region81: #{tpu_custom_call.1} parent=75 // pred_check
          %p607 = pneg %p90
        $region82: #{tpu_custom_call.1} parent=75 // pred_check_branch
          %609 = sbr.rel (%p607) target = $region84
        $region83: #{tpu_custom_call.1} parent=75 // pred_region
          %611 = dma.done %s603, 2048
        $region84: #{tpu_custom_call.1} parent=75 // pred_fallthru
          _
        // Predicated region
        $region85: #{tpu_custom_call.1} parent=75 // pred_check
          %p612 = pneg %p111
        $region86: #{tpu_custom_call.1} parent=75 // pred_check_branch
          %614 = sbr.rel (%p612) target = $region88
        $region87: #{tpu_custom_call.1} parent=75 // pred_region
          %616 = dma.done [#allocation6], 2048
        $region88: #{tpu_custom_call.1} parent=75 // pred_fallthru
          _
        // Predicated region
        $region89: #{tpu_custom_call.1} parent=75 // pred_check
          %p617 = pneg %p153
        $region90: #{tpu_custom_call.1} parent=75 // pred_check_branch
          %619 = sbr.rel (%p617) target = $region92
        $region91: #{tpu_custom_call.1} parent=75 // pred_region
          %621 = dma.done [#allocation9], 2048
        $region92: #{tpu_custom_call.1} parent=75 // pred_fallthru
          _
        // Predicated region
        $region93: #{tpu_custom_call.1} parent=75 // pred_check
          %p622 = pneg %p195
        $region94: #{tpu_custom_call.1} parent=75 // pred_check_branch
          %624 = sbr.rel (%p622) target = $region96
        $region95: #{tpu_custom_call.1} parent=75 // pred_region
          %626 = dma.done [#allocation9], 4096
        $region96: #{tpu_custom_call.1} parent=75 // pred_fallthru
          _
        // Predicated region
        $region97: #{tpu_custom_call.1} parent=75 // pred_check
          %p627 = pneg %p237
        $region98: #{tpu_custom_call.1} parent=75 // pred_check_branch
          %629 = sbr.rel (%p627) target = $region100
        $region99: #{tpu_custom_call.1} parent=75 // pred_region
          %631 = dma.done [#allocation12], 2048
        $region100: #{tpu_custom_call.1} parent=75 // pred_fallthru
          _
        // Predicated region
        $region101: #{tpu_custom_call.1} parent=75 // pred_check
          %p632 = pneg %p279
        $region102: #{tpu_custom_call.1} parent=75 // pred_check_branch
          %634 = sbr.rel (%p632) target = $region104
        $region103: #{tpu_custom_call.1} parent=75 // pred_region
          %636 = dma.done [#allocation12], 2048
        $region104: #{tpu_custom_call.1} parent=75 // pred_fallthru
          _
        // Predicated region
        $region105: #{tpu_custom_call.1} parent=75 // pred_check
          %p637 = pneg %p321
        $region106: #{tpu_custom_call.1} parent=75 // pred_check_branch
          %639 = sbr.rel (%p637) target = $region108
        $region107: #{tpu_custom_call.1} parent=75 // pred_region
          %641 = dma.done [#allocation15], 2048
        $region108: #{tpu_custom_call.1} parent=75 // pred_fallthru
          _
        %s642 = sand.u32 %s51, 1
        %s643 = scalar_lea.sflag [#allocation3], %s642
        %s644 = sand.u32 %s51, 1
        %s645 = smul.addr %s644, 128
        %s646 = scalar_lea.vmem [#allocation2], %s645
        %p647 = pneg %p64
        %p648 = pneg %p61
        %s649 = sand.u32 %s43, 1
        %s650 = scalar_lea.sflag [#allocation6], %s649
        %s651 = sand.u32 %s77, 1
        %s652 = smul.addr %s651, 128
        %s653 = scalar_lea.vmem [#allocation5], %s652
        %p654 = pneg %p90
        %p655 = pneg %p87
        %p656 = pneg %p111
        %p657 = pneg %p108
        %p658 = pneg %p132
        %p659 = pneg %p129
        %p660 = pneg %p153
        %p661 = pneg %p150
        %p662 = pneg %p174
        %p663 = pneg %p171
        %p664 = pneg %p195
        %p665 = pneg %p192
        %p666 = pneg %p216
        %p667 = pneg %p213
        %p668 = pneg %p237
        %p669 = pneg %p234
        %p670 = pneg %p258
        %p671 = pneg %p255
        %p672 = pneg %p279
        %p673 = pneg %p276
        %p674 = pneg %p300
        %p675 = pneg %p297
        %p676 = pneg %p321
        %p677 = pneg %p318
        %p678 = pneg %p342
        %p679 = pneg %p339
        %p680 = pneg %p368
        %p681 = pneg %p365
        %s682 = sand.u32 %s355, 1
        %s683 = scalar_lea.sflag [#allocation4], %s682
        %s684 = sand.u32 %s355, 1
        %s685 = smul.addr %s684, 128
        %s686 = scalar_lea.vmem [#allocation16], %s685
        %p687 = pneg %p394
        %p688 = pneg %p391
        %s689 = sand.u32 %s43, 1
        %s690 = scalar_lea.sflag [#allocation18], %s689
        %s691 = sand.u32 %s381, 1
        %s692 = smul.addr %s691, 128
        %s693 = scalar_lea.vmem [#allocation17], %s692
        %p694 = pneg %p420
        %p695 = pneg %p417
        %s696 = sand.u32 %s43, 1
        %s697 = scalar_lea.sflag [#allocation18], %s696
        %s698 = sand.u32 %s407, 1
        %s699 = smul.addr %s698, 128
        %s700 = scalar_lea.vmem [#allocation19], %s699
        %s701 = smul.u32 16, %s43
        %s702 = smul.u32 16, %s43
        %s703 = smul.u32 16, %s43
        %s704 = smul.u32 16, %s43
        %s705 = smul.u32 16, %s43
        %v706 = vld [vmem:[%s596] sm:$0xff]
        %v707 = vld [vmem:[%s596 + $0x8] sm:$0xff]
        %v708 = vld [vmem:[%s596 + $0x10] sm:$0xff]
        %v709 = vld [vmem:[%s596 + $0x18] sm:$0xff]
        %v710 = vld [vmem:[%s596 + $0x20] sm:$0xff]
        %v711 = vld [vmem:[%s596 + $0x28] sm:$0xff]
        %v712 = vld [vmem:[%s596 + $0x30] sm:$0xff]
        %v713 = vld [vmem:[%s596 + $0x38] sm:$0xff]
        %v714 = vld [vmem:[%s596 + $0x40] sm:$0xff]
        %v715 = vld [vmem:[%s596 + $0x48] sm:$0xff]
        %v716 = vld [vmem:[%s596 + $0x50] sm:$0xff]
        %v717 = vld [vmem:[%s596 + $0x58] sm:$0xff]
        %v718 = vld [vmem:[%s596 + $0x60] sm:$0xff]
        %v719 = vld [vmem:[%s596 + $0x68] sm:$0xff]
        %v720 = vld [vmem:[%s596 + $0x70] sm:$0xff]
        %v721 = vld [vmem:[%s596 + $0x78] sm:$0xff]
        %v722 = vld [vmem:[#allocation7] sm:$0xff]
        %v723 = vld [vmem:[#allocation7 + $0x8] sm:$0xff]
        %v724 = vld [vmem:[#allocation7 + $0x10] sm:$0xff]
        %v725 = vld [vmem:[#allocation7 + $0x18] sm:$0xff]
        %v726 = vld [vmem:[#allocation7 + $0x20] sm:$0xff]
        %v727 = vld [vmem:[#allocation7 + $0x28] sm:$0xff]
        %v728 = vld [vmem:[#allocation7 + $0x30] sm:$0xff]
        %v729 = vld [vmem:[#allocation7 + $0x38] sm:$0xff]
        %v730 = vld [vmem:[#allocation7 + $0x40] sm:$0xff]
        %v731 = vld [vmem:[#allocation7 + $0x48] sm:$0xff]
        %v732 = vld [vmem:[#allocation7 + $0x50] sm:$0xff]
        %v733 = vld [vmem:[#allocation7 + $0x58] sm:$0xff]
        %v734 = vld [vmem:[#allocation7 + $0x60] sm:$0xff]
        %v735 = vld [vmem:[#allocation7 + $0x68] sm:$0xff]
        %v736 = vld [vmem:[#allocation7 + $0x70] sm:$0xff]
        %v737 = vld [vmem:[#allocation7 + $0x78] sm:$0xff]
        %v738 = vld [vmem:[%s3] sm:$0x1]
        %v740 = vperm.slane %v738, 0
        %742 = vmatpush.msra.mxu0 %v737
        %743 = vmatpush.msra.mxu0 %v736
        %744 = vmatpush.msra.mxu0 %v735
        %745 = vmatpush.msra.mxu0 %v734
        %746 = vmatpush.msra.mxu0 %v733
        %747 = vmatpush.msra.mxu0 %v732
        %748 = vmatpush.msra.mxu0 %v731
        %749 = vmatpush.msra.mxu0 %v730
        %750 = vmatpush.msra.mxu0 %v729
        %751 = vmatpush.msra.mxu0 %v728
        %752 = vmatpush.msra.mxu0 %v727
        %753 = vmatpush.msra.mxu0 %v726
        %754 = vmatpush.msra.mxu0 %v725
        %755 = vmatpush.msra.mxu0 %v724
        %756 = vmatpush.msra.mxu0 %v723
        %757 = vmatpush.msra.mxu0 %v722
        %758 = vmatmul.f32.gmra.mxu0 %v706
        %v759 = vpop.f32.mrf.mxu0
        %v760 = vadd.f32 %v740, %v759
        %761 = vmatmul.f32.gmra.mxu0 %v707
        %v762 = vpop.f32.mrf.mxu0
        %v763 = vadd.f32 %v740, %v762
        %764 = vmatmul.f32.gmra.mxu0 %v708
        %v765 = vpop.f32.mrf.mxu0
        %v766 = vadd.f32 %v740, %v765
        %767 = vmatmul.f32.gmra.mxu0 %v709
        %v768 = vpop.f32.mrf.mxu0
        %v769 = vadd.f32 %v740, %v768
        %770 = vmatmul.f32.gmra.mxu0 %v710
        %v771 = vpop.f32.mrf.mxu0
        %v772 = vadd.f32 %v740, %v771
        %773 = vmatmul.f32.gmra.mxu0 %v711
        %v774 = vpop.f32.mrf.mxu0
        %v775 = vadd.f32 %v740, %v774
        %776 = vmatmul.f32.gmra.mxu0 %v712
        %v777 = vpop.f32.mrf.mxu0
        %v778 = vadd.f32 %v740, %v777
        %779 = vmatmul.f32.gmra.mxu0 %v713
        %v780 = vpop.f32.mrf.mxu0
        %v781 = vadd.f32 %v740, %v780
        %782 = vmatmul.f32.gmra.mxu0 %v714
        %v783 = vpop.f32.mrf.mxu0
        %v784 = vadd.f32 %v740, %v783
        %785 = vmatmul.f32.gmra.mxu0 %v715
        %v786 = vpop.f32.mrf.mxu0
        %v787 = vadd.f32 %v740, %v786
        %788 = vmatmul.f32.gmra.mxu0 %v716
        %v789 = vpop.f32.mrf.mxu0
        %v790 = vadd.f32 %v740, %v789
        %791 = vmatmul.f32.gmra.mxu0 %v717
        %v792 = vpop.f32.mrf.mxu0
        %v793 = vadd.f32 %v740, %v792
        %794 = vmatmul.f32.gmra.mxu0 %v718
        %v795 = vpop.f32.mrf.mxu0
        %v796 = vadd.f32 %v740, %v795
        %797 = vmatmul.f32.gmra.mxu0 %v719
        %v798 = vpop.f32.mrf.mxu0
        %v799 = vadd.f32 %v740, %v798
        %800 = vmatmul.f32.gmra.mxu0 %v720
        %v801 = vpop.f32.mrf.mxu0
        %v802 = vadd.f32 %v740, %v801
        %803 = vmatmul.f32.gmra.mxu0 %v721
        %v804 = vpop.f32.mrf.mxu0
        %v805 = vadd.f32 %v740, %v804
        %806 = vdwg.mxu0
        %v807 = vmax.f32 %v760, 0.0
        %v808 = vmax.f32 %v763, 0.0
        %v809 = vmax.f32 %v766, 0.0
        %v810 = vmax.f32 %v769, 0.0
        %v811 = vmax.f32 %v772, 0.0
        %v812 = vmax.f32 %v775, 0.0
        %v813 = vmax.f32 %v778, 0.0
        %v814 = vmax.f32 %v781, 0.0
        %v815 = vmax.f32 %v784, 0.0
        %v816 = vmax.f32 %v787, 0.0
        %v817 = vmax.f32 %v790, 0.0
        %v818 = vmax.f32 %v793, 0.0
        %v819 = vmax.f32 %v796, 0.0
        %v820 = vmax.f32 %v799, 0.0
        %v821 = vmax.f32 %v802, 0.0
        %v822 = vmax.f32 %v805, 0.0
        %v823 = vld [vmem:[#allocation8] sm:$0xff]
        %v824 = vld [vmem:[#allocation8 + $0x8] sm:$0xff]
        %v825 = vld [vmem:[#allocation8 + $0x10] sm:$0xff]
        %v826 = vld [vmem:[#allocation8 + $0x18] sm:$0xff]
        %v827 = vld [vmem:[#allocation8 + $0x20] sm:$0xff]
        %v828 = vld [vmem:[#allocation8 + $0x28] sm:$0xff]
        %v829 = vld [vmem:[#allocation8 + $0x30] sm:$0xff]
        %v830 = vld [vmem:[#allocation8 + $0x38] sm:$0xff]
        %v831 = vld [vmem:[#allocation8 + $0x40] sm:$0xff]
        %v832 = vld [vmem:[#allocation8 + $0x48] sm:$0xff]
        %v833 = vld [vmem:[#allocation8 + $0x50] sm:$0xff]
        %v834 = vld [vmem:[#allocation8 + $0x58] sm:$0xff]
        %v835 = vld [vmem:[#allocation8 + $0x60] sm:$0xff]
        %v836 = vld [vmem:[#allocation8 + $0x68] sm:$0xff]
        %v837 = vld [vmem:[#allocation8 + $0x70] sm:$0xff]
        %v838 = vld [vmem:[#allocation8 + $0x78] sm:$0xff]
        %v839 = vld [vmem:[%s5] sm:$0x1]
        %v841 = vperm.slane %v839, 0
        %843 = vmatpush.msra.mxu0 %v838
        %844 = vmatpush.msra.mxu0 %v837
        %845 = vmatpush.msra.mxu0 %v836
        %846 = vmatpush.msra.mxu0 %v835
        %847 = vmatpush.msra.mxu0 %v834
        %848 = vmatpush.msra.mxu0 %v833
        %849 = vmatpush.msra.mxu0 %v832
        %850 = vmatpush.msra.mxu0 %v831
        %851 = vmatpush.msra.mxu0 %v830
        %852 = vmatpush.msra.mxu0 %v829
        %853 = vmatpush.msra.mxu0 %v828
        %854 = vmatpush.msra.mxu0 %v827
        %855 = vmatpush.msra.mxu0 %v826
        %856 = vmatpush.msra.mxu0 %v825
        %857 = vmatpush.msra.mxu0 %v824
        %858 = vmatpush.msra.mxu0 %v823
        %859 = vmatmul.f32.gmra.mxu0 %v807
        %v860 = vpop.f32.mrf.mxu0
        %v861 = vadd.f32 %v841, %v860
        %862 = vmatmul.f32.gmra.mxu0 %v808
        %v863 = vpop.f32.mrf.mxu0
        %v864 = vadd.f32 %v841, %v863
        %865 = vmatmul.f32.gmra.mxu0 %v809
        %v866 = vpop.f32.mrf.mxu0
        %v867 = vadd.f32 %v841, %v866
        %868 = vmatmul.f32.gmra.mxu0 %v810
        %v869 = vpop.f32.mrf.mxu0
        %v870 = vadd.f32 %v841, %v869
        %871 = vmatmul.f32.gmra.mxu0 %v811
        %v872 = vpop.f32.mrf.mxu0
        %v873 = vadd.f32 %v841, %v872
        %874 = vmatmul.f32.gmra.mxu0 %v812
        %v875 = vpop.f32.mrf.mxu0
        %v876 = vadd.f32 %v841, %v875
        %877 = vmatmul.f32.gmra.mxu0 %v813
        %v878 = vpop.f32.mrf.mxu0
        %v879 = vadd.f32 %v841, %v878
        %880 = vmatmul.f32.gmra.mxu0 %v814
        %v881 = vpop.f32.mrf.mxu0
        %v882 = vadd.f32 %v841, %v881
        %883 = vmatmul.f32.gmra.mxu0 %v815
        %v884 = vpop.f32.mrf.mxu0
        %v885 = vadd.f32 %v841, %v884
        %886 = vmatmul.f32.gmra.mxu0 %v816
        %v887 = vpop.f32.mrf.mxu0
        %v888 = vadd.f32 %v841, %v887
        %889 = vmatmul.f32.gmra.mxu0 %v817
        %v890 = vpop.f32.mrf.mxu0
        %v891 = vadd.f32 %v841, %v890
        %892 = vmatmul.f32.gmra.mxu0 %v818
        %v893 = vpop.f32.mrf.mxu0
        %v894 = vadd.f32 %v841, %v893
        %895 = vmatmul.f32.gmra.mxu0 %v819
        %v896 = vpop.f32.mrf.mxu0
        %v897 = vadd.f32 %v841, %v896
        %898 = vmatmul.f32.gmra.mxu0 %v820
        %v899 = vpop.f32.mrf.mxu0
        %v900 = vadd.f32 %v841, %v899
        %901 = vmatmul.f32.gmra.mxu0 %v821
        %v902 = vpop.f32.mrf.mxu0
        %v903 = vadd.f32 %v841, %v902
        %904 = vmatmul.f32.gmra.mxu0 %v822
        %v905 = vpop.f32.mrf.mxu0
        %v906 = vadd.f32 %v841, %v905
        %907 = vdwg.mxu0
        %v908 = vmax.f32 %v861, 0.0
        %v909 = vmax.f32 %v864, 0.0
        %v910 = vmax.f32 %v867, 0.0
        %v911 = vmax.f32 %v870, 0.0
        %v912 = vmax.f32 %v873, 0.0
        %v913 = vmax.f32 %v876, 0.0
        %v914 = vmax.f32 %v879, 0.0
        %v915 = vmax.f32 %v882, 0.0
        %v916 = vmax.f32 %v885, 0.0
        %v917 = vmax.f32 %v888, 0.0
        %v918 = vmax.f32 %v891, 0.0
        %v919 = vmax.f32 %v894, 0.0
        %v920 = vmax.f32 %v897, 0.0
        %v921 = vmax.f32 %v900, 0.0
        %v922 = vmax.f32 %v903, 0.0
        %v923 = vmax.f32 %v906, 0.0
        %v924 = vld [vmem:[#allocation10] sm:$0xff]
        %v925 = vld [vmem:[#allocation10 + $0x8] sm:$0xff]
        %v926 = vld [vmem:[#allocation10 + $0x10] sm:$0xff]
        %v927 = vld [vmem:[#allocation10 + $0x18] sm:$0xff]
        %v928 = vld [vmem:[#allocation10 + $0x20] sm:$0xff]
        %v929 = vld [vmem:[#allocation10 + $0x28] sm:$0xff]
        %v930 = vld [vmem:[#allocation10 + $0x30] sm:$0xff]
        %v931 = vld [vmem:[#allocation10 + $0x38] sm:$0xff]
        %v932 = vld [vmem:[#allocation10 + $0x40] sm:$0xff]
        %v933 = vld [vmem:[#allocation10 + $0x48] sm:$0xff]
        %v934 = vld [vmem:[#allocation10 + $0x50] sm:$0xff]
        %v935 = vld [vmem:[#allocation10 + $0x58] sm:$0xff]
        %v936 = vld [vmem:[#allocation10 + $0x60] sm:$0xff]
        %v937 = vld [vmem:[#allocation10 + $0x68] sm:$0xff]
        %v938 = vld [vmem:[#allocation10 + $0x70] sm:$0xff]
        %v939 = vld [vmem:[#allocation10 + $0x78] sm:$0xff]
        %v940 = vld [vmem:[#allocation10 + $0x80] sm:$0xff]
        %v941 = vld [vmem:[#allocation10 + $0x88] sm:$0xff]
        %v942 = vld [vmem:[#allocation10 + $0x90] sm:$0xff]
        %v943 = vld [vmem:[#allocation10 + $0x98] sm:$0xff]
        %v944 = vld [vmem:[#allocation10 + $0xa0] sm:$0xff]
        %v945 = vld [vmem:[#allocation10 + $0xa8] sm:$0xff]
        %v946 = vld [vmem:[#allocation10 + $0xb0] sm:$0xff]
        %v947 = vld [vmem:[#allocation10 + $0xb8] sm:$0xff]
        %v948 = vld [vmem:[#allocation10 + $0xc0] sm:$0xff]
        %v949 = vld [vmem:[#allocation10 + $0xc8] sm:$0xff]
        %v950 = vld [vmem:[#allocation10 + $0xd0] sm:$0xff]
        %v951 = vld [vmem:[#allocation10 + $0xd8] sm:$0xff]
        %v952 = vld [vmem:[#allocation10 + $0xe0] sm:$0xff]
        %v953 = vld [vmem:[#allocation10 + $0xe8] sm:$0xff]
        %v954 = vld [vmem:[#allocation10 + $0xf0] sm:$0xff]
        %v955 = vld [vmem:[#allocation10 + $0xf8] sm:$0xff]
        %v956 = vld [vmem:[%s7] sm:$0x3]
        %v958 = vperm.slane %v956, 0
        %v959 = vperm.slane %v956, 1
        %962 = vmatpush.msra.mxu0 %v954
        %963 = vmatpush.msra.mxu0 %v952
        %964 = vmatpush.msra.mxu0 %v950
        %965 = vmatpush.msra.mxu0 %v948
        %966 = vmatpush.msra.mxu0 %v946
        %967 = vmatpush.msra.mxu0 %v944
        %968 = vmatpush.msra.mxu0 %v942
        %969 = vmatpush.msra.mxu0 %v940
        %970 = vmatpush.msra.mxu0 %v938
        %971 = vmatpush.msra.mxu0 %v936
        %972 = vmatpush.msra.mxu0 %v934
        %973 = vmatpush.msra.mxu0 %v932
        %974 = vmatpush.msra.mxu0 %v930
        %975 = vmatpush.msra.mxu0 %v928
        %976 = vmatpush.msra.mxu0 %v926
        %977 = vmatpush.msra.mxu0 %v924
        %978 = vmatmul.f32.gmra.mxu0 %v908
        %v979 = vpop.f32.mrf.mxu0
        %v980 = vadd.f32 %v958, %v979
        %981 = vmatmul.f32.gmra.mxu0 %v909
        %v982 = vpop.f32.mrf.mxu0
        %v983 = vadd.f32 %v958, %v982
        %984 = vmatmul.f32.gmra.mxu0 %v910
        %v985 = vpop.f32.mrf.mxu0
        %v986 = vadd.f32 %v958, %v985
        %987 = vmatmul.f32.gmra.mxu0 %v911
        %v988 = vpop.f32.mrf.mxu0
        %v989 = vadd.f32 %v958, %v988
        %990 = vmatmul.f32.gmra.mxu0 %v912
        %v991 = vpop.f32.mrf.mxu0
        %v992 = vadd.f32 %v958, %v991
        %993 = vmatmul.f32.gmra.mxu0 %v913
        %v994 = vpop.f32.mrf.mxu0
        %v995 = vadd.f32 %v958, %v994
        %996 = vmatmul.f32.gmra.mxu0 %v914
        %v997 = vpop.f32.mrf.mxu0
        %v998 = vadd.f32 %v958, %v997
        %999 = vmatmul.f32.gmra.mxu0 %v915
        %v1000 = vpop.f32.mrf.mxu0
        %v1001 = vadd.f32 %v958, %v1000
        %1002 = vmatmul.f32.gmra.mxu0 %v916
        %v1003 = vpop.f32.mrf.mxu0
        %v1004 = vadd.f32 %v958, %v1003
        %1005 = vmatmul.f32.gmra.mxu0 %v917
        %v1006 = vpop.f32.mrf.mxu0
        %v1007 = vadd.f32 %v958, %v1006
        %1008 = vmatmul.f32.gmra.mxu0 %v918
        %v1009 = vpop.f32.mrf.mxu0
        %v1010 = vadd.f32 %v958, %v1009
        %1011 = vmatmul.f32.gmra.mxu0 %v919
        %v1012 = vpop.f32.mrf.mxu0
        %v1013 = vadd.f32 %v958, %v1012
        %1014 = vmatmul.f32.gmra.mxu0 %v920
        %v1015 = vpop.f32.mrf.mxu0
        %v1016 = vadd.f32 %v958, %v1015
        %1017 = vmatmul.f32.gmra.mxu0 %v921
        %v1018 = vpop.f32.mrf.mxu0
        %v1019 = vadd.f32 %v958, %v1018
        %1020 = vmatmul.f32.gmra.mxu0 %v922
        %v1021 = vpop.f32.mrf.mxu0
        %v1022 = vadd.f32 %v958, %v1021
        %1023 = vmatmul.f32.gmra.mxu0 %v923
        %v1024 = vpop.f32.mrf.mxu0
        %v1025 = vadd.f32 %v958, %v1024
        %1026 = vdwg.mxu0
        %1027 = vmatpush.msra.mxu0 %v955
        %1028 = vmatpush.msra.mxu0 %v953
        %1029 = vmatpush.msra.mxu0 %v951
        %1030 = vmatpush.msra.mxu0 %v949
        %1031 = vmatpush.msra.mxu0 %v947
        %1032 = vmatpush.msra.mxu0 %v945
        %1033 = vmatpush.msra.mxu0 %v943
        %1034 = vmatpush.msra.mxu0 %v941
        %1035 = vmatpush.msra.mxu0 %v939
        %1036 = vmatpush.msra.mxu0 %v937
        %1037 = vmatpush.msra.mxu0 %v935
        %1038 = vmatpush.msra.mxu0 %v933
        %1039 = vmatpush.msra.mxu0 %v931
        %1040 = vmatpush.msra.mxu0 %v929
        %1041 = vmatpush.msra.mxu0 %v927
        %1042 = vmatpush.msra.mxu0 %v925
        %1043 = vmatmul.f32.gmra.mxu0 %v908
        %v1044 = vpop.f32.mrf.mxu0
        %v1045 = vadd.f32 %v959, %v1044
        %1046 = vmatmul.f32.gmra.mxu0 %v909
        %v1047 = vpop.f32.mrf.mxu0
        %v1048 = vadd.f32 %v959, %v1047
        %1049 = vmatmul.f32.gmra.mxu0 %v910
        %v1050 = vpop.f32.mrf.mxu0
        %v1051 = vadd.f32 %v959, %v1050
        %1052 = vmatmul.f32.gmra.mxu0 %v911
        %v1053 = vpop.f32.mrf.mxu0
        %v1054 = vadd.f32 %v959, %v1053
        %1055 = vmatmul.f32.gmra.mxu0 %v912
        %v1056 = vpop.f32.mrf.mxu0
        %v1057 = vadd.f32 %v959, %v1056
        %1058 = vmatmul.f32.gmra.mxu0 %v913
        %v1059 = vpop.f32.mrf.mxu0
        %v1060 = vadd.f32 %v959, %v1059
        %1061 = vmatmul.f32.gmra.mxu0 %v914
        %v1062 = vpop.f32.mrf.mxu0
        %v1063 = vadd.f32 %v959, %v1062
        %1064 = vmatmul.f32.gmra.mxu0 %v915
        %v1065 = vpop.f32.mrf.mxu0
        %v1066 = vadd.f32 %v959, %v1065
        %1067 = vmatmul.f32.gmra.mxu0 %v916
        %v1068 = vpop.f32.mrf.mxu0
        %v1069 = vadd.f32 %v959, %v1068
        %1070 = vmatmul.f32.gmra.mxu0 %v917
        %v1071 = vpop.f32.mrf.mxu0
        %v1072 = vadd.f32 %v959, %v1071
        %1073 = vmatmul.f32.gmra.mxu0 %v918
        %v1074 = vpop.f32.mrf.mxu0
        %v1075 = vadd.f32 %v959, %v1074
        %1076 = vmatmul.f32.gmra.mxu0 %v919
        %v1077 = vpop.f32.mrf.mxu0
        %v1078 = vadd.f32 %v959, %v1077
        %1079 = vmatmul.f32.gmra.mxu0 %v920
        %v1080 = vpop.f32.mrf.mxu0
        %v1081 = vadd.f32 %v959, %v1080
        %1082 = vmatmul.f32.gmra.mxu0 %v921
        %v1083 = vpop.f32.mrf.mxu0
        %v1084 = vadd.f32 %v959, %v1083
        %1085 = vmatmul.f32.gmra.mxu0 %v922
        %v1086 = vpop.f32.mrf.mxu0
        %v1087 = vadd.f32 %v959, %v1086
        %1088 = vmatmul.f32.gmra.mxu0 %v923
        %v1089 = vpop.f32.mrf.mxu0
        %v1090 = vadd.f32 %v959, %v1089
        %1091 = vdwg.mxu0
        %v1092 = vmul.f32 %v1045, 0.5
        %v1093 = vmul.f32 %v1048, 0.5
        %v1094 = vmul.f32 %v1051, 0.5
        %v1095 = vmul.f32 %v1054, 0.5
        %v1096 = vmul.f32 %v1057, 0.5
        %v1097 = vmul.f32 %v1060, 0.5
        %v1098 = vmul.f32 %v1063, 0.5
        %v1099 = vmul.f32 %v1066, 0.5
        %v1100 = vmul.f32 %v1069, 0.5
        %v1101 = vmul.f32 %v1072, 0.5
        %v1102 = vmul.f32 %v1075, 0.5
        %v1103 = vmul.f32 %v1078, 0.5
        %v1104 = vmul.f32 %v1081, 0.5
        %v1105 = vmul.f32 %v1084, 0.5
        %v1106 = vmul.f32 %v1087, 0.5
        %v1107 = vmul.f32 %v1090, 0.5
        %v1108 = vmul.f32 %v1092, 1.442695
        %v1109 = vpow.pop %v1108
        %v1110 = vmul.f32 %v1093, 1.442695
        %v1111 = vpow.pop %v1110
        %v1112 = vmul.f32 %v1094, 1.442695
        %v1113 = vpow.pop %v1112
        %v1114 = vmul.f32 %v1095, 1.442695
        %v1115 = vpow.pop %v1114
        %v1116 = vmul.f32 %v1096, 1.442695
        %v1117 = vpow.pop %v1116
        %v1118 = vmul.f32 %v1097, 1.442695
        %v1119 = vpow.pop %v1118
        %v1120 = vmul.f32 %v1098, 1.442695
        %v1121 = vpow.pop %v1120
        %v1122 = vmul.f32 %v1099, 1.442695
        %v1123 = vpow.pop %v1122
        %v1124 = vmul.f32 %v1100, 1.442695
        %v1125 = vpow.pop %v1124
        %v1126 = vmul.f32 %v1101, 1.442695
        %v1127 = vpow.pop %v1126
        %v1128 = vmul.f32 %v1102, 1.442695
        %v1129 = vpow.pop %v1128
        %v1130 = vmul.f32 %v1103, 1.442695
        %v1131 = vpow.pop %v1130
        %v1132 = vmul.f32 %v1104, 1.442695
        %v1133 = vpow.pop %v1132
        %v1134 = vmul.f32 %v1105, 1.442695
        %v1135 = vpow.pop %v1134
        %v1136 = vmul.f32 %v1106, 1.442695
        %v1137 = vpow.pop %v1136
        %v1138 = vmul.f32 %v1107, 1.442695
        %v1139 = vpow.pop %v1138
        %v1140 = vld [vmem:[%s606] sm:$0xff]
        %v1141 = vld [vmem:[%s606 + $0x8] sm:$0xff]
        %v1142 = vld [vmem:[%s606 + $0x10] sm:$0xff]
        %v1143 = vld [vmem:[%s606 + $0x18] sm:$0xff]
        %v1144 = vld [vmem:[%s606 + $0x20] sm:$0xff]
        %v1145 = vld [vmem:[%s606 + $0x28] sm:$0xff]
        %v1146 = vld [vmem:[%s606 + $0x30] sm:$0xff]
        %v1147 = vld [vmem:[%s606 + $0x38] sm:$0xff]
        %v1148 = vld [vmem:[%s606 + $0x40] sm:$0xff]
        %v1149 = vld [vmem:[%s606 + $0x48] sm:$0xff]
        %v1150 = vld [vmem:[%s606 + $0x50] sm:$0xff]
        %v1151 = vld [vmem:[%s606 + $0x58] sm:$0xff]
        %v1152 = vld [vmem:[%s606 + $0x60] sm:$0xff]
        %v1153 = vld [vmem:[%s606 + $0x68] sm:$0xff]
        %v1154 = vld [vmem:[%s606 + $0x70] sm:$0xff]
        %v1155 = vld [vmem:[%s606 + $0x78] sm:$0xff]
        %v1156 = vmul.f32 %v1140, %v1109
        %v1157 = vmul.f32 %v1141, %v1111
        %v1158 = vmul.f32 %v1142, %v1113
        %v1159 = vmul.f32 %v1143, %v1115
        %v1160 = vmul.f32 %v1144, %v1117
        %v1161 = vmul.f32 %v1145, %v1119
        %v1162 = vmul.f32 %v1146, %v1121
        %v1163 = vmul.f32 %v1147, %v1123
        %v1164 = vmul.f32 %v1148, %v1125
        %v1165 = vmul.f32 %v1149, %v1127
        %v1166 = vmul.f32 %v1150, %v1129
        %v1167 = vmul.f32 %v1151, %v1131
        %v1168 = vmul.f32 %v1152, %v1133
        %v1169 = vmul.f32 %v1153, %v1135
        %v1170 = vmul.f32 %v1154, %v1137
        %v1171 = vmul.f32 %v1155, %v1139
        %v1172 = vadd.f32 %v980, %v1156
        %v1173 = vadd.f32 %v983, %v1157
        %v1174 = vadd.f32 %v986, %v1158
        %v1175 = vadd.f32 %v989, %v1159
        %v1176 = vadd.f32 %v992, %v1160
        %v1177 = vadd.f32 %v995, %v1161
        %v1178 = vadd.f32 %v998, %v1162
        %v1179 = vadd.f32 %v1001, %v1163
        %v1180 = vadd.f32 %v1004, %v1164
        %v1181 = vadd.f32 %v1007, %v1165
        %v1182 = vadd.f32 %v1010, %v1166
        %v1183 = vadd.f32 %v1013, %v1167
        %v1184 = vadd.f32 %v1016, %v1168
        %v1185 = vadd.f32 %v1019, %v1169
        %v1186 = vadd.f32 %v1022, %v1170
        %v1187 = vadd.f32 %v1025, %v1171
        %v1188 = vld [vmem:[#allocation11] sm:$0xff]
        %v1189 = vld [vmem:[#allocation11 + $0x8] sm:$0xff]
        %v1190 = vld [vmem:[#allocation11 + $0x10] sm:$0xff]
        %v1191 = vld [vmem:[#allocation11 + $0x18] sm:$0xff]
        %v1192 = vld [vmem:[#allocation11 + $0x20] sm:$0xff]
        %v1193 = vld [vmem:[#allocation11 + $0x28] sm:$0xff]
        %v1194 = vld [vmem:[#allocation11 + $0x30] sm:$0xff]
        %v1195 = vld [vmem:[#allocation11 + $0x38] sm:$0xff]
        %v1196 = vld [vmem:[#allocation11 + $0x40] sm:$0xff]
        %v1197 = vld [vmem:[#allocation11 + $0x48] sm:$0xff]
        %v1198 = vld [vmem:[#allocation11 + $0x50] sm:$0xff]
        %v1199 = vld [vmem:[#allocation11 + $0x58] sm:$0xff]
        %v1200 = vld [vmem:[#allocation11 + $0x60] sm:$0xff]
        %v1201 = vld [vmem:[#allocation11 + $0x68] sm:$0xff]
        %v1202 = vld [vmem:[#allocation11 + $0x70] sm:$0xff]
        %v1203 = vld [vmem:[#allocation11 + $0x78] sm:$0xff]
        %v1204 = vld [vmem:[%s9] sm:$0x1]
        %v1206 = vperm.slane %v1204, 0
        %1208 = vmatpush.msra.mxu0 %v1203
        %1209 = vmatpush.msra.mxu0 %v1202
        %1210 = vmatpush.msra.mxu0 %v1201
        %1211 = vmatpush.msra.mxu0 %v1200
        %1212 = vmatpush.msra.mxu0 %v1199
        %1213 = vmatpush.msra.mxu0 %v1198
        %1214 = vmatpush.msra.mxu0 %v1197
        %1215 = vmatpush.msra.mxu0 %v1196
        %1216 = vmatpush.msra.mxu0 %v1195
        %1217 = vmatpush.msra.mxu0 %v1194
        %1218 = vmatpush.msra.mxu0 %v1193
        %1219 = vmatpush.msra.mxu0 %v1192
        %1220 = vmatpush.msra.mxu0 %v1191
        %1221 = vmatpush.msra.mxu0 %v1190
        %1222 = vmatpush.msra.mxu0 %v1189
        %1223 = vmatpush.msra.mxu0 %v1188
        %1224 = vmatmul.f32.gmra.mxu0 %v1172
        %v1225 = vpop.f32.mrf.mxu0
        %v1226 = vadd.f32 %v1206, %v1225
        %1227 = vmatmul.f32.gmra.mxu0 %v1173
        %v1228 = vpop.f32.mrf.mxu0
        %v1229 = vadd.f32 %v1206, %v1228
        %1230 = vmatmul.f32.gmra.mxu0 %v1174
        %v1231 = vpop.f32.mrf.mxu0
        %v1232 = vadd.f32 %v1206, %v1231
        %1233 = vmatmul.f32.gmra.mxu0 %v1175
        %v1234 = vpop.f32.mrf.mxu0
        %v1235 = vadd.f32 %v1206, %v1234
        %1236 = vmatmul.f32.gmra.mxu0 %v1176
        %v1237 = vpop.f32.mrf.mxu0
        %v1238 = vadd.f32 %v1206, %v1237
        %1239 = vmatmul.f32.gmra.mxu0 %v1177
        %v1240 = vpop.f32.mrf.mxu0
        %v1241 = vadd.f32 %v1206, %v1240
        %1242 = vmatmul.f32.gmra.mxu0 %v1178
        %v1243 = vpop.f32.mrf.mxu0
        %v1244 = vadd.f32 %v1206, %v1243
        %1245 = vmatmul.f32.gmra.mxu0 %v1179
        %v1246 = vpop.f32.mrf.mxu0
        %v1247 = vadd.f32 %v1206, %v1246
        %1248 = vmatmul.f32.gmra.mxu0 %v1180
        %v1249 = vpop.f32.mrf.mxu0
        %v1250 = vadd.f32 %v1206, %v1249
        %1251 = vmatmul.f32.gmra.mxu0 %v1181
        %v1252 = vpop.f32.mrf.mxu0
        %v1253 = vadd.f32 %v1206, %v1252
        %1254 = vmatmul.f32.gmra.mxu0 %v1182
        %v1255 = vpop.f32.mrf.mxu0
        %v1256 = vadd.f32 %v1206, %v1255
        %1257 = vmatmul.f32.gmra.mxu0 %v1183
        %v1258 = vpop.f32.mrf.mxu0
        %v1259 = vadd.f32 %v1206, %v1258
        %1260 = vmatmul.f32.gmra.mxu0 %v1184
        %v1261 = vpop.f32.mrf.mxu0
        %v1262 = vadd.f32 %v1206, %v1261
        %1263 = vmatmul.f32.gmra.mxu0 %v1185
        %v1264 = vpop.f32.mrf.mxu0
        %v1265 = vadd.f32 %v1206, %v1264
        %1266 = vmatmul.f32.gmra.mxu0 %v1186
        %v1267 = vpop.f32.mrf.mxu0
        %v1268 = vadd.f32 %v1206, %v1267
        %1269 = vmatmul.f32.gmra.mxu0 %v1187
        %v1270 = vpop.f32.mrf.mxu0
        %v1271 = vadd.f32 %v1206, %v1270
        %1272 = vdwg.mxu0
        %v1273 = vmax.f32 %v1226, 0.0
        %v1274 = vmax.f32 %v1229, 0.0
        %v1275 = vmax.f32 %v1232, 0.0
        %v1276 = vmax.f32 %v1235, 0.0
        %v1277 = vmax.f32 %v1238, 0.0
        %v1278 = vmax.f32 %v1241, 0.0
        %v1279 = vmax.f32 %v1244, 0.0
        %v1280 = vmax.f32 %v1247, 0.0
        %v1281 = vmax.f32 %v1250, 0.0
        %v1282 = vmax.f32 %v1253, 0.0
        %v1283 = vmax.f32 %v1256, 0.0
        %v1284 = vmax.f32 %v1259, 0.0
        %v1285 = vmax.f32 %v1262, 0.0
        %v1286 = vmax.f32 %v1265, 0.0
        %v1287 = vmax.f32 %v1268, 0.0
        %v1288 = vmax.f32 %v1271, 0.0
        %v1289 = vld [vmem:[#allocation13] sm:$0xff]
        %v1290 = vld [vmem:[#allocation13 + $0x8] sm:$0xff]
        %v1291 = vld [vmem:[#allocation13 + $0x10] sm:$0xff]
        %v1292 = vld [vmem:[#allocation13 + $0x18] sm:$0xff]
        %v1293 = vld [vmem:[#allocation13 + $0x20] sm:$0xff]
        %v1294 = vld [vmem:[#allocation13 + $0x28] sm:$0xff]
        %v1295 = vld [vmem:[#allocation13 + $0x30] sm:$0xff]
        %v1296 = vld [vmem:[#allocation13 + $0x38] sm:$0xff]
        %v1297 = vld [vmem:[#allocation13 + $0x40] sm:$0xff]
        %v1298 = vld [vmem:[#allocation13 + $0x48] sm:$0xff]
        %v1299 = vld [vmem:[#allocation13 + $0x50] sm:$0xff]
        %v1300 = vld [vmem:[#allocation13 + $0x58] sm:$0xff]
        %v1301 = vld [vmem:[#allocation13 + $0x60] sm:$0xff]
        %v1302 = vld [vmem:[#allocation13 + $0x68] sm:$0xff]
        %v1303 = vld [vmem:[#allocation13 + $0x70] sm:$0xff]
        %v1304 = vld [vmem:[#allocation13 + $0x78] sm:$0xff]
        %v1305 = vld [vmem:[%s11] sm:$0x1]
        %v1307 = vperm.slane %v1305, 0
        %1309 = vmatpush.msra.mxu0 %v1304
        %1310 = vmatpush.msra.mxu0 %v1303
        %1311 = vmatpush.msra.mxu0 %v1302
        %1312 = vmatpush.msra.mxu0 %v1301
        %1313 = vmatpush.msra.mxu0 %v1300
        %1314 = vmatpush.msra.mxu0 %v1299
        %1315 = vmatpush.msra.mxu0 %v1298
        %1316 = vmatpush.msra.mxu0 %v1297
        %1317 = vmatpush.msra.mxu0 %v1296
        %1318 = vmatpush.msra.mxu0 %v1295
        %1319 = vmatpush.msra.mxu0 %v1294
        %1320 = vmatpush.msra.mxu0 %v1293
        %1321 = vmatpush.msra.mxu0 %v1292
        %1322 = vmatpush.msra.mxu0 %v1291
        %1323 = vmatpush.msra.mxu0 %v1290
        %1324 = vmatpush.msra.mxu0 %v1289
        %1325 = vmatmul.f32.gmra.mxu0 %v1273
        %v1326 = vpop.f32.mrf.mxu0
        %v1327 = vadd.f32 %v1307, %v1326
        %1328 = vmatmul.f32.gmra.mxu0 %v1274
        %v1329 = vpop.f32.mrf.mxu0
        %v1330 = vadd.f32 %v1307, %v1329
        %1331 = vmatmul.f32.gmra.mxu0 %v1275
        %v1332 = vpop.f32.mrf.mxu0
        %v1333 = vadd.f32 %v1307, %v1332
        %1334 = vmatmul.f32.gmra.mxu0 %v1276
        %v1335 = vpop.f32.mrf.mxu0
        %v1336 = vadd.f32 %v1307, %v1335
        %1337 = vmatmul.f32.gmra.mxu0 %v1277
        %v1338 = vpop.f32.mrf.mxu0
        %v1339 = vadd.f32 %v1307, %v1338
        %1340 = vmatmul.f32.gmra.mxu0 %v1278
        %v1341 = vpop.f32.mrf.mxu0
        %v1342 = vadd.f32 %v1307, %v1341
        %1343 = vmatmul.f32.gmra.mxu0 %v1279
        %v1344 = vpop.f32.mrf.mxu0
        %v1345 = vadd.f32 %v1307, %v1344
        %1346 = vmatmul.f32.gmra.mxu0 %v1280
        %v1347 = vpop.f32.mrf.mxu0
        %v1348 = vadd.f32 %v1307, %v1347
        %1349 = vmatmul.f32.gmra.mxu0 %v1281
        %v1350 = vpop.f32.mrf.mxu0
        %v1351 = vadd.f32 %v1307, %v1350
        %1352 = vmatmul.f32.gmra.mxu0 %v1282
        %v1353 = vpop.f32.mrf.mxu0
        %v1354 = vadd.f32 %v1307, %v1353
        %1355 = vmatmul.f32.gmra.mxu0 %v1283
        %v1356 = vpop.f32.mrf.mxu0
        %v1357 = vadd.f32 %v1307, %v1356
        %1358 = vmatmul.f32.gmra.mxu0 %v1284
        %v1359 = vpop.f32.mrf.mxu0
        %v1360 = vadd.f32 %v1307, %v1359
        %1361 = vmatmul.f32.gmra.mxu0 %v1285
        %v1362 = vpop.f32.mrf.mxu0
        %v1363 = vadd.f32 %v1307, %v1362
        %1364 = vmatmul.f32.gmra.mxu0 %v1286
        %v1365 = vpop.f32.mrf.mxu0
        %v1366 = vadd.f32 %v1307, %v1365
        %1367 = vmatmul.f32.gmra.mxu0 %v1287
        %v1368 = vpop.f32.mrf.mxu0
        %v1369 = vadd.f32 %v1307, %v1368
        %1370 = vmatmul.f32.gmra.mxu0 %v1288
        %v1371 = vpop.f32.mrf.mxu0
        %v1372 = vadd.f32 %v1307, %v1371
        %1373 = vdwg.mxu0
        %v1374 = vmax.f32 %v1327, 0.0
        %v1375 = vmax.f32 %v1330, 0.0
        %v1376 = vmax.f32 %v1333, 0.0
        %v1377 = vmax.f32 %v1336, 0.0
        %v1378 = vmax.f32 %v1339, 0.0
        %v1379 = vmax.f32 %v1342, 0.0
        %v1380 = vmax.f32 %v1345, 0.0
        %v1381 = vmax.f32 %v1348, 0.0
        %v1382 = vmax.f32 %v1351, 0.0
        %v1383 = vmax.f32 %v1354, 0.0
        %v1384 = vmax.f32 %v1357, 0.0
        %v1385 = vmax.f32 %v1360, 0.0
        %v1386 = vmax.f32 %v1363, 0.0
        %v1387 = vmax.f32 %v1366, 0.0
        %v1388 = vmax.f32 %v1369, 0.0
        %v1389 = vmax.f32 %v1372, 0.0
        %v1390 = vld [vmem:[#allocation14] sm:$0xff]
        %v1391 = vld [vmem:[#allocation14 + $0x8] sm:$0xff]
        %v1392 = vld [vmem:[#allocation14 + $0x10] sm:$0xff]
        %v1393 = vld [vmem:[#allocation14 + $0x18] sm:$0xff]
        %v1394 = vld [vmem:[#allocation14 + $0x20] sm:$0xff]
        %v1395 = vld [vmem:[#allocation14 + $0x28] sm:$0xff]
        %v1396 = vld [vmem:[#allocation14 + $0x30] sm:$0xff]
        %v1397 = vld [vmem:[#allocation14 + $0x38] sm:$0xff]
        %v1398 = vld [vmem:[#allocation14 + $0x40] sm:$0xff]
        %v1399 = vld [vmem:[#allocation14 + $0x48] sm:$0xff]
        %v1400 = vld [vmem:[#allocation14 + $0x50] sm:$0xff]
        %v1401 = vld [vmem:[#allocation14 + $0x58] sm:$0xff]
        %v1402 = vld [vmem:[#allocation14 + $0x60] sm:$0xff]
        %v1403 = vld [vmem:[#allocation14 + $0x68] sm:$0xff]
        %v1404 = vld [vmem:[#allocation14 + $0x70] sm:$0xff]
        %v1405 = vld [vmem:[#allocation14 + $0x78] sm:$0xff]
        %v1406 = vld [vmem:[%s13] sm:$0x1]
        %v1408 = vperm.slane %v1406, 0
        %1410 = vmatpush.msra.mxu0 %v1405
        %1411 = vmatpush.msra.mxu0 %v1404
        %1412 = vmatpush.msra.mxu0 %v1403
        %1413 = vmatpush.msra.mxu0 %v1402
        %1414 = vmatpush.msra.mxu0 %v1401
        %1415 = vmatpush.msra.mxu0 %v1400
        %1416 = vmatpush.msra.mxu0 %v1399
        %1417 = vmatpush.msra.mxu0 %v1398
        %1418 = vmatpush.msra.mxu0 %v1397
        %1419 = vmatpush.msra.mxu0 %v1396
        %1420 = vmatpush.msra.mxu0 %v1395
        %1421 = vmatpush.msra.mxu0 %v1394
        %1422 = vmatpush.msra.mxu0 %v1393
        %1423 = vmatpush.msra.mxu0 %v1392
        %1424 = vmatpush.msra.mxu0 %v1391
        %1425 = vmatpush.msra.mxu0 %v1390
        %1426 = vmatmul.f32.gmra.mxu0 %v1374
        %v1427 = vpop.f32.mrf.mxu0
        %v1428 = vadd.f32 %v1408, %v1427
        %1429 = vmatmul.f32.gmra.mxu0 %v1375
        %v1430 = vpop.f32.mrf.mxu0
        %v1431 = vadd.f32 %v1408, %v1430
        %1432 = vmatmul.f32.gmra.mxu0 %v1376
        %v1433 = vpop.f32.mrf.mxu0
        %v1434 = vadd.f32 %v1408, %v1433
        %1435 = vmatmul.f32.gmra.mxu0 %v1377
        %v1436 = vpop.f32.mrf.mxu0
        %v1437 = vadd.f32 %v1408, %v1436
        %1438 = vmatmul.f32.gmra.mxu0 %v1378
        %v1439 = vpop.f32.mrf.mxu0
        %v1440 = vadd.f32 %v1408, %v1439
        %1441 = vmatmul.f32.gmra.mxu0 %v1379
        %v1442 = vpop.f32.mrf.mxu0
        %v1443 = vadd.f32 %v1408, %v1442
        %1444 = vmatmul.f32.gmra.mxu0 %v1380
        %v1445 = vpop.f32.mrf.mxu0
        %v1446 = vadd.f32 %v1408, %v1445
        %1447 = vmatmul.f32.gmra.mxu0 %v1381
        %v1448 = vpop.f32.mrf.mxu0
        %v1449 = vadd.f32 %v1408, %v1448
        %1450 = vmatmul.f32.gmra.mxu0 %v1382
        %v1451 = vpop.f32.mrf.mxu0
        %v1452 = vadd.f32 %v1408, %v1451
        %1453 = vmatmul.f32.gmra.mxu0 %v1383
        %v1454 = vpop.f32.mrf.mxu0
        %v1455 = vadd.f32 %v1408, %v1454
        %1456 = vmatmul.f32.gmra.mxu0 %v1384
        %v1457 = vpop.f32.mrf.mxu0
        %v1458 = vadd.f32 %v1408, %v1457
        %1459 = vmatmul.f32.gmra.mxu0 %v1385
        %v1460 = vpop.f32.mrf.mxu0
        %v1461 = vadd.f32 %v1408, %v1460
        %1462 = vmatmul.f32.gmra.mxu0 %v1386
        %v1463 = vpop.f32.mrf.mxu0
        %v1464 = vadd.f32 %v1408, %v1463
        %1465 = vmatmul.f32.gmra.mxu0 %v1387
        %v1466 = vpop.f32.mrf.mxu0
        %v1467 = vadd.f32 %v1408, %v1466
        %1468 = vmatmul.f32.gmra.mxu0 %v1388
        %v1469 = vpop.f32.mrf.mxu0
        %v1470 = vadd.f32 %v1408, %v1469
        %1471 = vmatmul.f32.gmra.mxu0 %v1389
        %v1472 = vpop.f32.mrf.mxu0
        %v1473 = vadd.f32 %v1408, %v1472
        %1474 = vdwg.mxu0
        %1475 = vst [vmem:[%s686] sm:$0xff] %v1428
        %1476 = vst [vmem:[%s686 + $0x8] sm:$0xff] %v1431
        %1477 = vst [vmem:[%s686 + $0x10] sm:$0xff] %v1434
        %1478 = vst [vmem:[%s686 + $0x18] sm:$0xff] %v1437
        %1479 = vst [vmem:[%s686 + $0x20] sm:$0xff] %v1440
        %1480 = vst [vmem:[%s686 + $0x28] sm:$0xff] %v1443
        %1481 = vst [vmem:[%s686 + $0x30] sm:$0xff] %v1446
        %1482 = vst [vmem:[%s686 + $0x38] sm:$0xff] %v1449
        %1483 = vst [vmem:[%s686 + $0x40] sm:$0xff] %v1452
        %1484 = vst [vmem:[%s686 + $0x48] sm:$0xff] %v1455
        %1485 = vst [vmem:[%s686 + $0x50] sm:$0xff] %v1458
        %1486 = vst [vmem:[%s686 + $0x58] sm:$0xff] %v1461
        %1487 = vst [vmem:[%s686 + $0x60] sm:$0xff] %v1464
        %1488 = vst [vmem:[%s686 + $0x68] sm:$0xff] %v1467
        %1489 = vst [vmem:[%s686 + $0x70] sm:$0xff] %v1470
        %1490 = vst [vmem:[%s686 + $0x78] sm:$0xff] %v1473
        %1491 = vst [vmem:[%s693] sm:$0xff] %v980
        %1492 = vst [vmem:[%s693 + $0x8] sm:$0xff] %v983
        %1493 = vst [vmem:[%s693 + $0x10] sm:$0xff] %v986
        %1494 = vst [vmem:[%s693 + $0x18] sm:$0xff] %v989
        %1495 = vst [vmem:[%s693 + $0x20] sm:$0xff] %v992
        %1496 = vst [vmem:[%s693 + $0x28] sm:$0xff] %v995
        %1497 = vst [vmem:[%s693 + $0x30] sm:$0xff] %v998
        %1498 = vst [vmem:[%s693 + $0x38] sm:$0xff] %v1001
        %1499 = vst [vmem:[%s693 + $0x40] sm:$0xff] %v1004
        %1500 = vst [vmem:[%s693 + $0x48] sm:$0xff] %v1007
        %1501 = vst [vmem:[%s693 + $0x50] sm:$0xff] %v1010
        %1502 = vst [vmem:[%s693 + $0x58] sm:$0xff] %v1013
        %1503 = vst [vmem:[%s693 + $0x60] sm:$0xff] %v1016
        %1504 = vst [vmem:[%s693 + $0x68] sm:$0xff] %v1019
        %1505 = vst [vmem:[%s693 + $0x70] sm:$0xff] %v1022
        %1506 = vst [vmem:[%s693 + $0x78] sm:$0xff] %v1025
        %1507 = vst [vmem:[%s700] sm:$0xff] %v1045
        %1508 = vst [vmem:[%s700 + $0x8] sm:$0xff] %v1048
        %1509 = vst [vmem:[%s700 + $0x10] sm:$0xff] %v1051
        %1510 = vst [vmem:[%s700 + $0x18] sm:$0xff] %v1054
        %1511 = vst [vmem:[%s700 + $0x20] sm:$0xff] %v1057
        %1512 = vst [vmem:[%s700 + $0x28] sm:$0xff] %v1060
        %1513 = vst [vmem:[%s700 + $0x30] sm:$0xff] %v1063
        %1514 = vst [vmem:[%s700 + $0x38] sm:$0xff] %v1066
        %1515 = vst [vmem:[%s700 + $0x40] sm:$0xff] %v1069
        %1516 = vst [vmem:[%s700 + $0x48] sm:$0xff] %v1072
        %1517 = vst [vmem:[%s700 + $0x50] sm:$0xff] %v1075
        %1518 = vst [vmem:[%s700 + $0x58] sm:$0xff] %v1078
        %1519 = vst [vmem:[%s700 + $0x60] sm:$0xff] %v1081
        %1520 = vst [vmem:[%s700 + $0x68] sm:$0xff] %v1084
        %1521 = vst [vmem:[%s700 + $0x70] sm:$0xff] %v1087
        %1522 = vst [vmem:[%s700 + $0x78] sm:$0xff] %v1090
        %s1523 = sand.u32 %s355, 1
        %s1524 = scalar_lea.sflag [#allocation4], %s1523
        %s1525 = sand.u32 %s355, 1
        %s1526 = smul.addr %s1525, 128
        %s1527 = scalar_lea.vmem [#allocation16], %s1526
        %s1528 = sand.u32 %s43, 1
        %s1529 = scalar_lea.sflag [#allocation18], %s1528
        %s1530 = sand.u32 %s381, 1
        %s1531 = smul.addr %s1530, 128
        %s1532 = scalar_lea.vmem [#allocation17], %s1531
        %s1533 = sand.u32 %s43, 1
        %s1534 = scalar_lea.sflag [#allocation18], %s1533
        %s1535 = sand.u32 %s407, 1
        %s1536 = smul.addr %s1535, 128
        %s1537 = scalar_lea.vmem [#allocation19], %s1536
        // Predicated region
        $region109: #{tpu_custom_call.1} parent=75 // pred_check
          %p1538 = pneg %p365
        $region110: #{tpu_custom_call.1} parent=75 // pred_check_branch
          %1540 = sbr.rel (%p1538) target = $region112
        $region111: #{tpu_custom_call.1} parent=75 // pred_region
          %s1541 = smul.u32 16, %s43
          %1543 = vsyncadd %s1524, 0
          %s1544 = smul.addr %s1541, 8
          %s1545 = scalar_lea.hbm %s14, %s1544
          %s1546 = sshll.u32 %s1527, 4
          %s1547 = int_to_ptr.vmem [resolvable:$true] %s1546
          %s1548 = sshll.u32 %s1545, 4
          %s1549 = int_to_ptr.hbm [resolvable:$true] %s1548
          %1554 = dma.vmem_to_hbm [thread:$0]  %s1547, 2048, %s1549, %s1524, 128, 128, 8
        $region112: #{tpu_custom_call.1} parent=75 // pred_fallthru
          _
        // Predicated region
        $region113: #{tpu_custom_call.1} parent=75 // pred_check
          %p1555 = pneg %p391
        $region114: #{tpu_custom_call.1} parent=75 // pred_check_branch
          %1557 = sbr.rel (%p1555) target = $region116
        $region115: #{tpu_custom_call.1} parent=75 // pred_region
          %s1558 = smul.u32 16, %s43
          %1560 = vsyncadd %s1529, 0
          %s1561 = smul.addr %s1558, 8
          %s1562 = scalar_lea.hbm %s15, %s1561
          %s1563 = sshll.u32 %s1532, 4
          %s1564 = int_to_ptr.vmem [resolvable:$true] %s1563
          %s1565 = sshll.u32 %s1562, 4
          %s1566 = int_to_ptr.hbm [resolvable:$true] %s1565
          %1571 = dma.vmem_to_hbm [thread:$0]  %s1564, 2048, %s1566, %s1529, 128, 128, 8
        $region116: #{tpu_custom_call.1} parent=75 // pred_fallthru
          _
        // Predicated region
        $region117: #{tpu_custom_call.1} parent=75 // pred_check
          %p1572 = pneg %p417
        $region118: #{tpu_custom_call.1} parent=75 // pred_check_branch
          %1574 = sbr.rel (%p1572) target = $region120
        $region119: #{tpu_custom_call.1} parent=75 // pred_region
          %s1575 = smul.u32 16, %s43
          %1577 = vsyncadd %s1534, 0
          %s1578 = smul.addr %s1575, 8
          %s1579 = scalar_lea.hbm %s16, %s1578
          %s1580 = sshll.u32 %s1537, 4
          %s1581 = int_to_ptr.vmem [resolvable:$true] %s1580
          %s1582 = sshll.u32 %s1579, 4
          %s1583 = int_to_ptr.hbm [resolvable:$true] %s1582
          %1588 = dma.vmem_to_hbm [thread:$0]  %s1581, 2048, %s1583, %s1534, 128, 128, 8
        $region120: #{tpu_custom_call.1} parent=75 // pred_fallthru
          _
      $region76: #{tpu_custom_call.1} parent=5 // pred_fallthru
        _
      %p1589 = scmp.le.s32.totalorder 2, %s38
      // Predicated region
      $region121: #{tpu_custom_call.1} parent=5 // pred_check
        %p1590 = pneg %p1589
      $region122: #{tpu_custom_call.1} parent=5 // pred_check_branch
        %1592 = sbr.rel (%p1590) target = $region124
      $region123: #{tpu_custom_call.1} parent=5 // pred_region
        %s1593 = ssub.s32 %s38, 2
        // Predicated region
        $region125: #{tpu_custom_call.1} parent=123 // pred_check
          %p1594 = pneg %p371
        $region126: #{tpu_custom_call.1} parent=123 // pred_check_branch
          %1596 = sbr.rel (%p1594) target = $region128
        $region127: #{tpu_custom_call.1} parent=123 // pred_region
          %s1597 = sand.u32 %s356, 1
          %s1598 = scalar_lea.sflag [#allocation4], %s1597
          %s1599 = sand.u32 %s356, 1
          %s1600 = smul.addr %s1599, 128
          %s1601 = scalar_lea.vmem [#allocation16], %s1600
          %1603 = dma.done %s1598, 2048
        $region128: #{tpu_custom_call.1} parent=123 // pred_fallthru
          _
        // Predicated region
        $region129: #{tpu_custom_call.1} parent=123 // pred_check
          %p1604 = pneg %p397
        $region130: #{tpu_custom_call.1} parent=123 // pred_check_branch
          %1606 = sbr.rel (%p1604) target = $region132
        $region131: #{tpu_custom_call.1} parent=123 // pred_region
          %s1607 = sand.u32 %s44, 1
          %s1608 = scalar_lea.sflag [#allocation18], %s1607
          %s1609 = sand.u32 %s382, 1
          %s1610 = smul.addr %s1609, 128
          %s1611 = scalar_lea.vmem [#allocation17], %s1610
          %1613 = dma.done %s1608, 2048
        $region132: #{tpu_custom_call.1} parent=123 // pred_fallthru
          _
        // Predicated region
        $region133: #{tpu_custom_call.1} parent=123 // pred_check
          %p1614 = pneg %p423
        $region134: #{tpu_custom_call.1} parent=123 // pred_check_branch
          %1616 = sbr.rel (%p1614) target = $region136
        $region135: #{tpu_custom_call.1} parent=123 // pred_region
          %s1617 = sand.u32 %s44, 1
          %s1618 = scalar_lea.sflag [#allocation18], %s1617
          %s1619 = sand.u32 %s408, 1
          %s1620 = smul.addr %s1619, 128
          %s1621 = scalar_lea.vmem [#allocation19], %s1620
          %1623 = dma.done %s1618, 2048
        $region136: #{tpu_custom_call.1} parent=123 // pred_fallthru
          _
      $region124: #{tpu_custom_call.1} parent=5 // pred_fallthru
        _
    $region6: #{tpu_custom_call.1} parent=1 // loop_footer
      %s42 = sadd.s32 1, %s38
    $region7: #{tpu_custom_call.1} parent=1 // loop_footer_branch
      %37 = sbr.rel target = $region3
    $region8: #{tpu_custom_call.1} parent=1 // loop_exit
      _
    %1624 = vsyncpa [#allocation3], 1
    %s1625 = scalar_lea.sflag [#allocation3], 1
    %1626 = vsyncpa %s1625, 1
    %1627 = vsyncpa [#allocation6], 1
    %s1628 = scalar_lea.sflag [#allocation6], 1
    %1629 = vsyncpa %s1628, 1
    %1630 = vsyncpa [#allocation9], 1
    %1631 = vsyncpa [#allocation12], 1
    %1632 = vsyncpa [#allocation15], 1
    %1633 = vsyncpa [#allocation4], 1
    %s1634 = scalar_lea.sflag [#allocation4], 1
    %1635 = vsyncpa %s1634, 1
    %1636 = vsyncpa [#allocation18], 1
    %s1637 = scalar_lea.sflag [#allocation18], 1
    %1638 = vsyncpa %s1637, 1

</llo_original>
